<compile_context>
chip_gen: v7x
topology: tpu7x:2x2x1
jax: 0.10.0
libtpu: 0.0.40
codegen_flags: <defaults>
</compile_context>

<pallas_src>
import functools

import jax
import jax.numpy as jnp
from jax import lax
from jax.experimental import pallas as pl
from jax.experimental.pallas import tpu as pltpu

D_IN, D_H1, D_H2, D_OUT = 7, 10, 4, 1

# Flat parameter-vector offsets (f32, lives in SMEM inside the kernel).
_W1, _B1 = 0, 70          # w1: (10,7) row-major
_W2, _B2 = 80, 120        # w2: (4,10) row-major
_W3, _B3 = 124, 128       # w3: (1,4) row-major, b3: scalar
_P_LEN = 129


def mlp_kernel(p_ref, x_ref, o_ref):
    """Fused MLP forward on the VPU.

    p_ref : (129,) f32 SMEM   -- all weights/biases as scalars.
    x_ref : (7, C, 8, 128) bf16 VMEM -- batch tiled into C dense (8,128) chunks.
    o_ref : (C, 8, 128) f32 VMEM.
    """
    n_chunks = x_ref.shape[1]

    # Hoist all 129 weight/bias scalar loads out of the chunk loop.
    w1 = [[p_ref[_W1 + j * D_IN + k] for k in range(D_IN)] for j in range(D_H1)]
    b1 = [p_ref[_B1 + j] for j in range(D_H1)]
    w2 = [[p_ref[_W2 + j * D_H1 + k] for k in range(D_H1)] for j in range(D_H2)]
    b2 = [p_ref[_B2 + j] for j in range(D_H2)]
    w3 = [p_ref[_W3 + k] for k in range(D_H2)]
    b3 = p_ref[_B3]

    def chunk(c, carry):
        # One (8,128) vreg of samples per feature row; everything stays in vregs.
        xs = [x_ref[k, c].astype(jnp.float32) for k in range(D_IN)]   # 7 x (8,128)

        # Layer 1: 10 = relu(W1 @ 7 + b1), unrolled broadcast-FMA chain.
        h1 = []
        for j in range(D_H1):
            a = xs[0] * w1[j][0]
            for k in range(1, D_IN):
                a = a + xs[k] * w1[j][k]
            h1.append(jnp.maximum(a + b1[j], 0.0))

        # Layer 2: 4 = relu(W2 @ 10 + b2).
        h2 = []
        for j in range(D_H2):
            a = h1[0] * w2[j][0]
            for k in range(1, D_H1):
                a = a + h1[k] * w2[j][k]
            h2.append(jnp.maximum(a + b2[j], 0.0))

        # Layer 3: 1 = sigmoid(W3 @ 4 + b3); exp on the EUP.
        z = h2[0] * w3[0]
        for k in range(1, D_H2):
            z = z + h2[k] * w3[k]
        o_ref[c] = 1.0 / (1.0 + jnp.exp(-(z + b3)))
        return carry

    lax.fori_loop(0, n_chunks, chunk, 0)


def _pack_params(w1, b1, w2, b2, w3, b3):
    return jnp.concatenate(
        [w1.reshape(-1), b1.reshape(-1), w2.reshape(-1),
         b2.reshape(-1), w3.reshape(-1), b3.reshape(-1)]
    ).astype(jnp.float32)


@functools.partial(jax.jit, static_argnames=("block_b",))
def mlp_forward(x, w1, b1, w2, b2, w3, b3, *, block_b=65536):
    """x: (B, 7) f32.  w*: torch nn.Linear layout (out, in) f32.  b*: (out,) f32.

    block_b is the number of samples per grid step; it must be a multiple of
    1024 (one whole (8,128) tile).  The default 65536 keeps per-step pipeline
    overhead negligible while using ~2.3 MiB of VMEM per step (fits v5e/v6e and
    v7x's 64 MiB VMEM); for large B this also gives >=2 blocks so the
    "parallel" batch axis shards across v7x's two TensorCores.
    """
    if block_b % 1024 != 0:
        raise ValueError("block_b must be a multiple of 1024")

    B = x.shape[0]
    nc = -(-B // 1024)              # number of (8,128)-sample tiles (ceil)
    bp = nc * 1024                  # batch padded to whole tiles (<=1023 extra rows)
    c_blk = min(block_b // 1024, nc)  # tiles per grid step
    n_blocks = pl.cdiv(nc, c_blk)

    params = _pack_params(w1, b1, w2, b2, w3, b3)

    # Layout plumbing (fuse upstream in production): bf16 transfer dtype, pad to
    # whole (8,128) tiles, batch onto (sublane, lane).  XLA fuses cast+pad+
    # transpose into a single copy pass; the trailing reshape is free.
    xw = x.astype(jnp.bfloat16)
    if bp != B:
        xw = jnp.pad(xw, ((0, bp - B), (0, 0)))
    xt = xw.T.reshape(D_IN, nc, 8, 128)

    out = pl.pallas_call(
        mlp_kernel,
        out_shape=jax.ShapeDtypeStruct((nc, 8, 128), jnp.float32),
        grid_spec=pltpu.PrefetchScalarGridSpec(
            num_scalar_prefetch=0,
            grid=(n_blocks,),
            in_specs=[
                # All weights/biases as resident SMEM scalars (loaded once/step).
                pl.BlockSpec(memory_space=pltpu.MemorySpace.SMEM),
                # x tile: pipelined / double-buffered along the batch grid.
                pl.BlockSpec((D_IN, c_blk, 8, 128), lambda i: (0, i, 0, 0)),
            ],
            out_specs=pl.BlockSpec((c_blk, 8, 128), lambda i: (i, 0, 0)),
        ),
        compiler_params=pltpu.CompilerParams(
            dimension_semantics=("parallel",),
        ),
    )(params, xt)

    # Drop-in module semantics: (B, 1) f32.  Consumers that can take the dense
    # (nc, 8, 128) slab directly should, to skip this small extra pass.
    return out.reshape(-1)[:B].reshape(B, 1)


def _torch_linear_init(key, fan_in, fan_out):
    """Deterministic U(-1/sqrt(fan_in), 1/sqrt(fan_in)) init like nn.Linear."""
    kw, kb = jax.random.split(key)
    bound = float(fan_in) ** -0.5
    w = jax.random.uniform(kw, (fan_out, fan_in), jnp.float32, -bound, bound)
    b = jax.random.uniform(kb, (fan_out,), jnp.float32, -bound, bound)
    return w, b


if __name__ == "__main__":
    key = jax.random.PRNGKey(0)
    kx, k1, k2, k3 = jax.random.split(key, 4)

    B = 2000  # non-multiple of 1024: exercises tile padding + a 2-step batch grid
    x = jax.random.normal(kx, (B, D_IN), jnp.float32)

    w1, b1 = _torch_linear_init(k1, D_IN, D_H1)
    w2, b2 = _torch_linear_init(k2, D_H1, D_H2)
    w3, b3 = _torch_linear_init(k3, D_H2, D_OUT)

    out = mlp_forward(x, w1, b1, w2, b2, w3, b3, block_b=1024)
    out = jax.block_until_ready(out)

    # Reference in plain JAX; x rounded to bf16 to match the kernel's transfer
    # dtype (weights and all math are f32 in the kernel).
    xf = x.astype(jnp.bfloat16).astype(jnp.float32)
    hp = jax.lax.Precision.HIGHEST
    h1 = jnp.maximum(jnp.dot(xf, w1.T, precision=hp) + b1, 0.0)
    h2 = jnp.maximum(jnp.dot(h1, w2.T, precision=hp) + b2, 0.0)
    ref = jax.nn.sigmoid(jnp.dot(h2, w3.T, precision=hp) + b3)

    assert out.shape == (B, 1)
    assert bool(jnp.all(jnp.isfinite(out)))
    err = float(jnp.max(jnp.abs(out - ref)))
    assert jnp.allclose(out, ref, atol=1e-4), f"mismatch vs reference, max err {err}"

    print("KERNEL_OK")
</pallas_src>

<mosaic_0001>
module attributes {stable_mosaic.version = 11 : i64} {
  func.func @mlp_kernel(%arg0: i32, %arg1: memref<129xf32, #tpu.memory_space<smem>>, %arg2: memref<7x1x8x128xbf16, #tpu.memory_space<vmem>>, %arg3: memref<1x8x128xf32, #tpu.memory_space<vmem>>) attributes {dimension_semantics = [#tpu.dimension_semantics<parallel>], iteration_bounds = array<i64: 2>, scalar_prefetch = 0 : i64, scratch_operands = 0 : i64, tpu.core_type = #tpu.core_type<tc>, window_params = [{transform_indices = @transform_0, window_bounds = array<i64: 129>}, {transform_indices = @transform_1, window_bounds = array<i64: 7, 1, 8, 128>}, {transform_indices = @transform_2, window_bounds = array<i64: 1, 8, 128>}]} {
    %c0 = arith.constant 0 : index
    %0 = memref.load %arg1[%c0] : memref<129xf32, #tpu.memory_space<smem>>
    %c1 = arith.constant 1 : index
    %1 = memref.load %arg1[%c1] : memref<129xf32, #tpu.memory_space<smem>>
    %c2 = arith.constant 2 : index
    %2 = memref.load %arg1[%c2] : memref<129xf32, #tpu.memory_space<smem>>
    %c3 = arith.constant 3 : index
    %3 = memref.load %arg1[%c3] : memref<129xf32, #tpu.memory_space<smem>>
    %c4 = arith.constant 4 : index
    %4 = memref.load %arg1[%c4] : memref<129xf32, #tpu.memory_space<smem>>
    %c5 = arith.constant 5 : index
    %5 = memref.load %arg1[%c5] : memref<129xf32, #tpu.memory_space<smem>>
    %c6 = arith.constant 6 : index
    %6 = memref.load %arg1[%c6] : memref<129xf32, #tpu.memory_space<smem>>
    %c7 = arith.constant 7 : index
    %7 = memref.load %arg1[%c7] : memref<129xf32, #tpu.memory_space<smem>>
    %c8 = arith.constant 8 : index
    %8 = memref.load %arg1[%c8] : memref<129xf32, #tpu.memory_space<smem>>
    %c9 = arith.constant 9 : index
    %9 = memref.load %arg1[%c9] : memref<129xf32, #tpu.memory_space<smem>>
    %c10 = arith.constant 10 : index
    %10 = memref.load %arg1[%c10] : memref<129xf32, #tpu.memory_space<smem>>
    %c11 = arith.constant 11 : index
    %11 = memref.load %arg1[%c11] : memref<129xf32, #tpu.memory_space<smem>>
    %c12 = arith.constant 12 : index
    %12 = memref.load %arg1[%c12] : memref<129xf32, #tpu.memory_space<smem>>
    %c13 = arith.constant 13 : index
    %13 = memref.load %arg1[%c13] : memref<129xf32, #tpu.memory_space<smem>>
    %c14 = arith.constant 14 : index
    %14 = memref.load %arg1[%c14] : memref<129xf32, #tpu.memory_space<smem>>
    %c15 = arith.constant 15 : index
    %15 = memref.load %arg1[%c15] : memref<129xf32, #tpu.memory_space<smem>>
    %c16 = arith.constant 16 : index
    %16 = memref.load %arg1[%c16] : memref<129xf32, #tpu.memory_space<smem>>
    %c17 = arith.constant 17 : index
    %17 = memref.load %arg1[%c17] : memref<129xf32, #tpu.memory_space<smem>>
    %c18 = arith.constant 18 : index
    %18 = memref.load %arg1[%c18] : memref<129xf32, #tpu.memory_space<smem>>
    %c19 = arith.constant 19 : index
    %19 = memref.load %arg1[%c19] : memref<129xf32, #tpu.memory_space<smem>>
    %c20 = arith.constant 20 : index
    %20 = memref.load %arg1[%c20] : memref<129xf32, #tpu.memory_space<smem>>
    %c21 = arith.constant 21 : index
    %21 = memref.load %arg1[%c21] : memref<129xf32, #tpu.memory_space<smem>>
    %c22 = arith.constant 22 : index
    %22 = memref.load %arg1[%c22] : memref<129xf32, #tpu.memory_space<smem>>
    %c23 = arith.constant 23 : index
    %23 = memref.load %arg1[%c23] : memref<129xf32, #tpu.memory_space<smem>>
    %c24 = arith.constant 24 : index
    %24 = memref.load %arg1[%c24] : memref<129xf32, #tpu.memory_space<smem>>
    %c25 = arith.constant 25 : index
    %25 = memref.load %arg1[%c25] : memref<129xf32, #tpu.memory_space<smem>>
    %c26 = arith.constant 26 : index
    %26 = memref.load %arg1[%c26] : memref<129xf32, #tpu.memory_space<smem>>
    %c27 = arith.constant 27 : index
    %27 = memref.load %arg1[%c27] : memref<129xf32, #tpu.memory_space<smem>>
    %c28 = arith.constant 28 : index
    %28 = memref.load %arg1[%c28] : memref<129xf32, #tpu.memory_space<smem>>
    %c29 = arith.constant 29 : index
    %29 = memref.load %arg1[%c29] : memref<129xf32, #tpu.memory_space<smem>>
    %c30 = arith.constant 30 : index
    %30 = memref.load %arg1[%c30] : memref<129xf32, #tpu.memory_space<smem>>
    %c31 = arith.constant 31 : index
    %31 = memref.load %arg1[%c31] : memref<129xf32, #tpu.memory_space<smem>>
    %c32 = arith.constant 32 : index
    %32 = memref.load %arg1[%c32] : memref<129xf32, #tpu.memory_space<smem>>
    %c33 = arith.constant 33 : index
    %33 = memref.load %arg1[%c33] : memref<129xf32, #tpu.memory_space<smem>>
    %c34 = arith.constant 34 : index
    %34 = memref.load %arg1[%c34] : memref<129xf32, #tpu.memory_space<smem>>
    %c35 = arith.constant 35 : index
    %35 = memref.load %arg1[%c35] : memref<129xf32, #tpu.memory_space<smem>>
    %c36 = arith.constant 36 : index
    %36 = memref.load %arg1[%c36] : memref<129xf32, #tpu.memory_space<smem>>
    %c37 = arith.constant 37 : index
    %37 = memref.load %arg1[%c37] : memref<129xf32, #tpu.memory_space<smem>>
    %c38 = arith.constant 38 : index
    %38 = memref.load %arg1[%c38] : memref<129xf32, #tpu.memory_space<smem>>
    %c39 = arith.constant 39 : index
    %39 = memref.load %arg1[%c39] : memref<129xf32, #tpu.memory_space<smem>>
    %c40 = arith.constant 40 : index
    %40 = memref.load %arg1[%c40] : memref<129xf32, #tpu.memory_space<smem>>
    %c41 = arith.constant 41 : index
    %41 = memref.load %arg1[%c41] : memref<129xf32, #tpu.memory_space<smem>>
    %c42 = arith.constant 42 : index
    %42 = memref.load %arg1[%c42] : memref<129xf32, #tpu.memory_space<smem>>
    %c43 = arith.constant 43 : index
    %43 = memref.load %arg1[%c43] : memref<129xf32, #tpu.memory_space<smem>>
    %c44 = arith.constant 44 : index
    %44 = memref.load %arg1[%c44] : memref<129xf32, #tpu.memory_space<smem>>
    %c45 = arith.constant 45 : index
    %45 = memref.load %arg1[%c45] : memref<129xf32, #tpu.memory_space<smem>>
    %c46 = arith.constant 46 : index
    %46 = memref.load %arg1[%c46] : memref<129xf32, #tpu.memory_space<smem>>
    %c47 = arith.constant 47 : index
    %47 = memref.load %arg1[%c47] : memref<129xf32, #tpu.memory_space<smem>>
    %c48 = arith.constant 48 : index
    %48 = memref.load %arg1[%c48] : memref<129xf32, #tpu.memory_space<smem>>
    %c49 = arith.constant 49 : index
    %49 = memref.load %arg1[%c49] : memref<129xf32, #tpu.memory_space<smem>>
    %c50 = arith.constant 50 : index
    %50 = memref.load %arg1[%c50] : memref<129xf32, #tpu.memory_space<smem>>
    %c51 = arith.constant 51 : index
    %51 = memref.load %arg1[%c51] : memref<129xf32, #tpu.memory_space<smem>>
    %c52 = arith.constant 52 : index
    %52 = memref.load %arg1[%c52] : memref<129xf32, #tpu.memory_space<smem>>
    %c53 = arith.constant 53 : index
    %53 = memref.load %arg1[%c53] : memref<129xf32, #tpu.memory_space<smem>>
    %c54 = arith.constant 54 : index
    %54 = memref.load %arg1[%c54] : memref<129xf32, #tpu.memory_space<smem>>
    %c55 = arith.constant 55 : index
    %55 = memref.load %arg1[%c55] : memref<129xf32, #tpu.memory_space<smem>>
    %c56 = arith.constant 56 : index
    %56 = memref.load %arg1[%c56] : memref<129xf32, #tpu.memory_space<smem>>
    %c57 = arith.constant 57 : index
    %57 = memref.load %arg1[%c57] : memref<129xf32, #tpu.memory_space<smem>>
    %c58 = arith.constant 58 : index
    %58 = memref.load %arg1[%c58] : memref<129xf32, #tpu.memory_space<smem>>
    %c59 = arith.constant 59 : index
    %59 = memref.load %arg1[%c59] : memref<129xf32, #tpu.memory_space<smem>>
    %c60 = arith.constant 60 : index
    %60 = memref.load %arg1[%c60] : memref<129xf32, #tpu.memory_space<smem>>
    %c61 = arith.constant 61 : index
    %61 = memref.load %arg1[%c61] : memref<129xf32, #tpu.memory_space<smem>>
    %c62 = arith.constant 62 : index
    %62 = memref.load %arg1[%c62] : memref<129xf32, #tpu.memory_space<smem>>
    %c63 = arith.constant 63 : index
    %63 = memref.load %arg1[%c63] : memref<129xf32, #tpu.memory_space<smem>>
    %c64 = arith.constant 64 : index
    %64 = memref.load %arg1[%c64] : memref<129xf32, #tpu.memory_space<smem>>
    %c65 = arith.constant 65 : index
    %65 = memref.load %arg1[%c65] : memref<129xf32, #tpu.memory_space<smem>>
    %c66 = arith.constant 66 : index
    %66 = memref.load %arg1[%c66] : memref<129xf32, #tpu.memory_space<smem>>
    %c67 = arith.constant 67 : index
    %67 = memref.load %arg1[%c67] : memref<129xf32, #tpu.memory_space<smem>>
    %c68 = arith.constant 68 : index
    %68 = memref.load %arg1[%c68] : memref<129xf32, #tpu.memory_space<smem>>
    %c69 = arith.constant 69 : index
    %69 = memref.load %arg1[%c69] : memref<129xf32, #tpu.memory_space<smem>>
    %c70 = arith.constant 70 : index
    %70 = memref.load %arg1[%c70] : memref<129xf32, #tpu.memory_space<smem>>
    %c71 = arith.constant 71 : index
    %71 = memref.load %arg1[%c71] : memref<129xf32, #tpu.memory_space<smem>>
    %c72 = arith.constant 72 : index
    %72 = memref.load %arg1[%c72] : memref<129xf32, #tpu.memory_space<smem>>
    %c73 = arith.constant 73 : index
    %73 = memref.load %arg1[%c73] : memref<129xf32, #tpu.memory_space<smem>>
    %c74 = arith.constant 74 : index
    %74 = memref.load %arg1[%c74] : memref<129xf32, #tpu.memory_space<smem>>
    %c75 = arith.constant 75 : index
    %75 = memref.load %arg1[%c75] : memref<129xf32, #tpu.memory_space<smem>>
    %c76 = arith.constant 76 : index
    %76 = memref.load %arg1[%c76] : memref<129xf32, #tpu.memory_space<smem>>
    %c77 = arith.constant 77 : index
    %77 = memref.load %arg1[%c77] : memref<129xf32, #tpu.memory_space<smem>>
    %c78 = arith.constant 78 : index
    %78 = memref.load %arg1[%c78] : memref<129xf32, #tpu.memory_space<smem>>
    %c79 = arith.constant 79 : index
    %79 = memref.load %arg1[%c79] : memref<129xf32, #tpu.memory_space<smem>>
    %c80 = arith.constant 80 : index
    %80 = memref.load %arg1[%c80] : memref<129xf32, #tpu.memory_space<smem>>
    %c81 = arith.constant 81 : index
    %81 = memref.load %arg1[%c81] : memref<129xf32, #tpu.memory_space<smem>>
    %c82 = arith.constant 82 : index
    %82 = memref.load %arg1[%c82] : memref<129xf32, #tpu.memory_space<smem>>
    %c83 = arith.constant 83 : index
    %83 = memref.load %arg1[%c83] : memref<129xf32, #tpu.memory_space<smem>>
    %c84 = arith.constant 84 : index
    %84 = memref.load %arg1[%c84] : memref<129xf32, #tpu.memory_space<smem>>
    %c85 = arith.constant 85 : index
    %85 = memref.load %arg1[%c85] : memref<129xf32, #tpu.memory_space<smem>>
    %c86 = arith.constant 86 : index
    %86 = memref.load %arg1[%c86] : memref<129xf32, #tpu.memory_space<smem>>
    %c87 = arith.constant 87 : index
    %87 = memref.load %arg1[%c87] : memref<129xf32, #tpu.memory_space<smem>>
    %c88 = arith.constant 88 : index
    %88 = memref.load %arg1[%c88] : memref<129xf32, #tpu.memory_space<smem>>
    %c89 = arith.constant 89 : index
    %89 = memref.load %arg1[%c89] : memref<129xf32, #tpu.memory_space<smem>>
    %c90 = arith.constant 90 : index
    %90 = memref.load %arg1[%c90] : memref<129xf32, #tpu.memory_space<smem>>
    %c91 = arith.constant 91 : index
    %91 = memref.load %arg1[%c91] : memref<129xf32, #tpu.memory_space<smem>>
    %c92 = arith.constant 92 : index
    %92 = memref.load %arg1[%c92] : memref<129xf32, #tpu.memory_space<smem>>
    %c93 = arith.constant 93 : index
    %93 = memref.load %arg1[%c93] : memref<129xf32, #tpu.memory_space<smem>>
    %c94 = arith.constant 94 : index
    %94 = memref.load %arg1[%c94] : memref<129xf32, #tpu.memory_space<smem>>
    %c95 = arith.constant 95 : index
    %95 = memref.load %arg1[%c95] : memref<129xf32, #tpu.memory_space<smem>>
    %c96 = arith.constant 96 : index
    %96 = memref.load %arg1[%c96] : memref<129xf32, #tpu.memory_space<smem>>
    %c97 = arith.constant 97 : index
    %97 = memref.load %arg1[%c97] : memref<129xf32, #tpu.memory_space<smem>>
    %c98 = arith.constant 98 : index
    %98 = memref.load %arg1[%c98] : memref<129xf32, #tpu.memory_space<smem>>
    %c99 = arith.constant 99 : index
    %99 = memref.load %arg1[%c99] : memref<129xf32, #tpu.memory_space<smem>>
    %c100 = arith.constant 100 : index
    %100 = memref.load %arg1[%c100] : memref<129xf32, #tpu.memory_space<smem>>
    %c101 = arith.constant 101 : index
    %101 = memref.load %arg1[%c101] : memref<129xf32, #tpu.memory_space<smem>>
    %c102 = arith.constant 102 : index
    %102 = memref.load %arg1[%c102] : memref<129xf32, #tpu.memory_space<smem>>
    %c103 = arith.constant 103 : index
    %103 = memref.load %arg1[%c103] : memref<129xf32, #tpu.memory_space<smem>>
    %c104 = arith.constant 104 : index
    %104 = memref.load %arg1[%c104] : memref<129xf32, #tpu.memory_space<smem>>
    %c105 = arith.constant 105 : index
    %105 = memref.load %arg1[%c105] : memref<129xf32, #tpu.memory_space<smem>>
    %c106 = arith.constant 106 : index
    %106 = memref.load %arg1[%c106] : memref<129xf32, #tpu.memory_space<smem>>
    %c107 = arith.constant 107 : index
    %107 = memref.load %arg1[%c107] : memref<129xf32, #tpu.memory_space<smem>>
    %c108 = arith.constant 108 : index
    %108 = memref.load %arg1[%c108] : memref<129xf32, #tpu.memory_space<smem>>
    %c109 = arith.constant 109 : index
    %109 = memref.load %arg1[%c109] : memref<129xf32, #tpu.memory_space<smem>>
    %c110 = arith.constant 110 : index
    %110 = memref.load %arg1[%c110] : memref<129xf32, #tpu.memory_space<smem>>
    %c111 = arith.constant 111 : index
    %111 = memref.load %arg1[%c111] : memref<129xf32, #tpu.memory_space<smem>>
    %c112 = arith.constant 112 : index
    %112 = memref.load %arg1[%c112] : memref<129xf32, #tpu.memory_space<smem>>
    %c113 = arith.constant 113 : index
    %113 = memref.load %arg1[%c113] : memref<129xf32, #tpu.memory_space<smem>>
    %c114 = arith.constant 114 : index
    %114 = memref.load %arg1[%c114] : memref<129xf32, #tpu.memory_space<smem>>
    %c115 = arith.constant 115 : index
    %115 = memref.load %arg1[%c115] : memref<129xf32, #tpu.memory_space<smem>>
    %c116 = arith.constant 116 : index
    %116 = memref.load %arg1[%c116] : memref<129xf32, #tpu.memory_space<smem>>
    %c117 = arith.constant 117 : index
    %117 = memref.load %arg1[%c117] : memref<129xf32, #tpu.memory_space<smem>>
    %c118 = arith.constant 118 : index
    %118 = memref.load %arg1[%c118] : memref<129xf32, #tpu.memory_space<smem>>
    %c119 = arith.constant 119 : index
    %119 = memref.load %arg1[%c119] : memref<129xf32, #tpu.memory_space<smem>>
    %c120 = arith.constant 120 : index
    %120 = memref.load %arg1[%c120] : memref<129xf32, #tpu.memory_space<smem>>
    %c121 = arith.constant 121 : index
    %121 = memref.load %arg1[%c121] : memref<129xf32, #tpu.memory_space<smem>>
    %c122 = arith.constant 122 : index
    %122 = memref.load %arg1[%c122] : memref<129xf32, #tpu.memory_space<smem>>
    %c123 = arith.constant 123 : index
    %123 = memref.load %arg1[%c123] : memref<129xf32, #tpu.memory_space<smem>>
    %c124 = arith.constant 124 : index
    %124 = memref.load %arg1[%c124] : memref<129xf32, #tpu.memory_space<smem>>
    %c125 = arith.constant 125 : index
    %125 = memref.load %arg1[%c125] : memref<129xf32, #tpu.memory_space<smem>>
    %c126 = arith.constant 126 : index
    %126 = memref.load %arg1[%c126] : memref<129xf32, #tpu.memory_space<smem>>
    %c127 = arith.constant 127 : index
    %127 = memref.load %arg1[%c127] : memref<129xf32, #tpu.memory_space<smem>>
    %c128 = arith.constant 128 : index
    %128 = memref.load %arg1[%c128] : memref<129xf32, #tpu.memory_space<smem>>
    %c0_i32 = arith.constant 0 : i32
    %c0_0 = arith.constant 0 : index
    %129 = arith.index_cast %c0_i32 : i32 to index
    %c0_1 = arith.constant 0 : index
    %c0_2 = arith.constant 0 : index
    %130 = vector.load %arg2[%c0_0, %129, %c0_1, %c0_2] : memref<7x1x8x128xbf16, #tpu.memory_space<vmem>>, vector<1x1x8x128xbf16>
    %131 = vector.shape_cast %130 : vector<1x1x8x128xbf16> to vector<8x128xbf16>
    %132 = arith.extf %131 : vector<8x128xbf16> to vector<8x128xf32>
    %c1_3 = arith.constant 1 : index
    %133 = arith.index_cast %c0_i32 : i32 to index
    %c0_4 = arith.constant 0 : index
    %c0_5 = arith.constant 0 : index
    %134 = vector.load %arg2[%c1_3, %133, %c0_4, %c0_5] : memref<7x1x8x128xbf16, #tpu.memory_space<vmem>>, vector<1x1x8x128xbf16>
    %135 = vector.shape_cast %134 : vector<1x1x8x128xbf16> to vector<8x128xbf16>
    %136 = arith.extf %135 : vector<8x128xbf16> to vector<8x128xf32>
    %c2_6 = arith.constant 2 : index
    %137 = arith.index_cast %c0_i32 : i32 to index
    %c0_7 = arith.constant 0 : index
    %c0_8 = arith.constant 0 : index
    %138 = vector.load %arg2[%c2_6, %137, %c0_7, %c0_8] : memref<7x1x8x128xbf16, #tpu.memory_space<vmem>>, vector<1x1x8x128xbf16>
    %139 = vector.shape_cast %138 : vector<1x1x8x128xbf16> to vector<8x128xbf16>
    %140 = arith.extf %139 : vector<8x128xbf16> to vector<8x128xf32>
    %c3_9 = arith.constant 3 : index
    %141 = arith.index_cast %c0_i32 : i32 to index
    %c0_10 = arith.constant 0 : index
    %c0_11 = arith.constant 0 : index
    %142 = vector.load %arg2[%c3_9, %141, %c0_10, %c0_11] : memref<7x1x8x128xbf16, #tpu.memory_space<vmem>>, vector<1x1x8x128xbf16>
    %143 = vector.shape_cast %142 : vector<1x1x8x128xbf16> to vector<8x128xbf16>
    %144 = arith.extf %143 : vector<8x128xbf16> to vector<8x128xf32>
    %c4_12 = arith.constant 4 : index
    %145 = arith.index_cast %c0_i32 : i32 to index
    %c0_13 = arith.constant 0 : index
    %c0_14 = arith.constant 0 : index
    %146 = vector.load %arg2[%c4_12, %145, %c0_13, %c0_14] : memref<7x1x8x128xbf16, #tpu.memory_space<vmem>>, vector<1x1x8x128xbf16>
    %147 = vector.shape_cast %146 : vector<1x1x8x128xbf16> to vector<8x128xbf16>
    %148 = arith.extf %147 : vector<8x128xbf16> to vector<8x128xf32>
    %c5_15 = arith.constant 5 : index
    %149 = arith.index_cast %c0_i32 : i32 to index
    %c0_16 = arith.constant 0 : index
    %c0_17 = arith.constant 0 : index
    %150 = vector.load %arg2[%c5_15, %149, %c0_16, %c0_17] : memref<7x1x8x128xbf16, #tpu.memory_space<vmem>>, vector<1x1x8x128xbf16>
    %151 = vector.shape_cast %150 : vector<1x1x8x128xbf16> to vector<8x128xbf16>
    %152 = arith.extf %151 : vector<8x128xbf16> to vector<8x128xf32>
    %c6_18 = arith.constant 6 : index
    %153 = arith.index_cast %c0_i32 : i32 to index
    %c0_19 = arith.constant 0 : index
    %c0_20 = arith.constant 0 : index
    %154 = vector.load %arg2[%c6_18, %153, %c0_19, %c0_20] : memref<7x1x8x128xbf16, #tpu.memory_space<vmem>>, vector<1x1x8x128xbf16>
    %155 = vector.shape_cast %154 : vector<1x1x8x128xbf16> to vector<8x128xbf16>
    %156 = arith.extf %155 : vector<8x128xbf16> to vector<8x128xf32>
    %157 = vector.broadcast %0 : f32 to vector<8x128xf32>
    %158 = arith.mulf %132, %157 : vector<8x128xf32>
    %159 = vector.broadcast %1 : f32 to vector<8x128xf32>
    %160 = arith.mulf %136, %159 : vector<8x128xf32>
    %161 = arith.addf %158, %160 : vector<8x128xf32>
    %162 = vector.broadcast %2 : f32 to vector<8x128xf32>
    %163 = arith.mulf %140, %162 : vector<8x128xf32>
    %164 = arith.addf %161, %163 : vector<8x128xf32>
    %165 = vector.broadcast %3 : f32 to vector<8x128xf32>
    %166 = arith.mulf %144, %165 : vector<8x128xf32>
    %167 = arith.addf %164, %166 : vector<8x128xf32>
    %168 = vector.broadcast %4 : f32 to vector<8x128xf32>
    %169 = arith.mulf %148, %168 : vector<8x128xf32>
    %170 = arith.addf %167, %169 : vector<8x128xf32>
    %171 = vector.broadcast %5 : f32 to vector<8x128xf32>
    %172 = arith.mulf %152, %171 : vector<8x128xf32>
    %173 = arith.addf %170, %172 : vector<8x128xf32>
    %174 = vector.broadcast %6 : f32 to vector<8x128xf32>
    %175 = arith.mulf %156, %174 : vector<8x128xf32>
    %176 = arith.addf %173, %175 : vector<8x128xf32>
    %177 = vector.broadcast %70 : f32 to vector<8x128xf32>
    %178 = arith.addf %176, %177 : vector<8x128xf32>
    %cst = arith.constant 0.000000e+00 : f32
    %179 = vector.broadcast %cst : f32 to vector<8x128xf32>
    %180 = arith.maximumf %178, %179 : vector<8x128xf32>
    %181 = vector.broadcast %7 : f32 to vector<8x128xf32>
    %182 = arith.mulf %132, %181 : vector<8x128xf32>
    %183 = vector.broadcast %8 : f32 to vector<8x128xf32>
    %184 = arith.mulf %136, %183 : vector<8x128xf32>
    %185 = arith.addf %182, %184 : vector<8x128xf32>
    %186 = vector.broadcast %9 : f32 to vector<8x128xf32>
    %187 = arith.mulf %140, %186 : vector<8x128xf32>
    %188 = arith.addf %185, %187 : vector<8x128xf32>
    %189 = vector.broadcast %10 : f32 to vector<8x128xf32>
    %190 = arith.mulf %144, %189 : vector<8x128xf32>
    %191 = arith.addf %188, %190 : vector<8x128xf32>
    %192 = vector.broadcast %11 : f32 to vector<8x128xf32>
    %193 = arith.mulf %148, %192 : vector<8x128xf32>
    %194 = arith.addf %191, %193 : vector<8x128xf32>
    %195 = vector.broadcast %12 : f32 to vector<8x128xf32>
    %196 = arith.mulf %152, %195 : vector<8x128xf32>
    %197 = arith.addf %194, %196 : vector<8x128xf32>
    %198 = vector.broadcast %13 : f32 to vector<8x128xf32>
    %199 = arith.mulf %156, %198 : vector<8x128xf32>
    %200 = arith.addf %197, %199 : vector<8x128xf32>
    %201 = vector.broadcast %71 : f32 to vector<8x128xf32>
    %202 = arith.addf %200, %201 : vector<8x128xf32>
    %cst_21 = arith.constant 0.000000e+00 : f32
    %203 = vector.broadcast %cst_21 : f32 to vector<8x128xf32>
    %204 = arith.maximumf %202, %203 : vector<8x128xf32>
    %205 = vector.broadcast %14 : f32 to vector<8x128xf32>
    %206 = arith.mulf %132, %205 : vector<8x128xf32>
    %207 = vector.broadcast %15 : f32 to vector<8x128xf32>
    %208 = arith.mulf %136, %207 : vector<8x128xf32>
    %209 = arith.addf %206, %208 : vector<8x128xf32>
    %210 = vector.broadcast %16 : f32 to vector<8x128xf32>
    %211 = arith.mulf %140, %210 : vector<8x128xf32>
    %212 = arith.addf %209, %211 : vector<8x128xf32>
    %213 = vector.broadcast %17 : f32 to vector<8x128xf32>
    %214 = arith.mulf %144, %213 : vector<8x128xf32>
    %215 = arith.addf %212, %214 : vector<8x128xf32>
    %216 = vector.broadcast %18 : f32 to vector<8x128xf32>
    %217 = arith.mulf %148, %216 : vector<8x128xf32>
    %218 = arith.addf %215, %217 : vector<8x128xf32>
    %219 = vector.broadcast %19 : f32 to vector<8x128xf32>
    %220 = arith.mulf %152, %219 : vector<8x128xf32>
    %221 = arith.addf %218, %220 : vector<8x128xf32>
    %222 = vector.broadcast %20 : f32 to vector<8x128xf32>
    %223 = arith.mulf %156, %222 : vector<8x128xf32>
    %224 = arith.addf %221, %223 : vector<8x128xf32>
    %225 = vector.broadcast %72 : f32 to vector<8x128xf32>
    %226 = arith.addf %224, %225 : vector<8x128xf32>
    %cst_22 = arith.constant 0.000000e+00 : f32
    %227 = vector.broadcast %cst_22 : f32 to vector<8x128xf32>
    %228 = arith.maximumf %226, %227 : vector<8x128xf32>
    %229 = vector.broadcast %21 : f32 to vector<8x128xf32>
    %230 = arith.mulf %132, %229 : vector<8x128xf32>
    %231 = vector.broadcast %22 : f32 to vector<8x128xf32>
    %232 = arith.mulf %136, %231 : vector<8x128xf32>
    %233 = arith.addf %230, %232 : vector<8x128xf32>
    %234 = vector.broadcast %23 : f32 to vector<8x128xf32>
    %235 = arith.mulf %140, %234 : vector<8x128xf32>
    %236 = arith.addf %233, %235 : vector<8x128xf32>
    %237 = vector.broadcast %24 : f32 to vector<8x128xf32>
    %238 = arith.mulf %144, %237 : vector<8x128xf32>
    %239 = arith.addf %236, %238 : vector<8x128xf32>
    %240 = vector.broadcast %25 : f32 to vector<8x128xf32>
    %241 = arith.mulf %148, %240 : vector<8x128xf32>
    %242 = arith.addf %239, %241 : vector<8x128xf32>
    %243 = vector.broadcast %26 : f32 to vector<8x128xf32>
    %244 = arith.mulf %152, %243 : vector<8x128xf32>
    %245 = arith.addf %242, %244 : vector<8x128xf32>
    %246 = vector.broadcast %27 : f32 to vector<8x128xf32>
    %247 = arith.mulf %156, %246 : vector<8x128xf32>
    %248 = arith.addf %245, %247 : vector<8x128xf32>
    %249 = vector.broadcast %73 : f32 to vector<8x128xf32>
    %250 = arith.addf %248, %249 : vector<8x128xf32>
    %cst_23 = arith.constant 0.000000e+00 : f32
    %251 = vector.broadcast %cst_23 : f32 to vector<8x128xf32>
    %252 = arith.maximumf %250, %251 : vector<8x128xf32>
    %253 = vector.broadcast %28 : f32 to vector<8x128xf32>
    %254 = arith.mulf %132, %253 : vector<8x128xf32>
    %255 = vector.broadcast %29 : f32 to vector<8x128xf32>
    %256 = arith.mulf %136, %255 : vector<8x128xf32>
    %257 = arith.addf %254, %256 : vector<8x128xf32>
    %258 = vector.broadcast %30 : f32 to vector<8x128xf32>
    %259 = arith.mulf %140, %258 : vector<8x128xf32>
    %260 = arith.addf %257, %259 : vector<8x128xf32>
    %261 = vector.broadcast %31 : f32 to vector<8x128xf32>
    %262 = arith.mulf %144, %261 : vector<8x128xf32>
    %263 = arith.addf %260, %262 : vector<8x128xf32>
    %264 = vector.broadcast %32 : f32 to vector<8x128xf32>
    %265 = arith.mulf %148, %264 : vector<8x128xf32>
    %266 = arith.addf %263, %265 : vector<8x128xf32>
    %267 = vector.broadcast %33 : f32 to vector<8x128xf32>
    %268 = arith.mulf %152, %267 : vector<8x128xf32>
    %269 = arith.addf %266, %268 : vector<8x128xf32>
    %270 = vector.broadcast %34 : f32 to vector<8x128xf32>
    %271 = arith.mulf %156, %270 : vector<8x128xf32>
    %272 = arith.addf %269, %271 : vector<8x128xf32>
    %273 = vector.broadcast %74 : f32 to vector<8x128xf32>
    %274 = arith.addf %272, %273 : vector<8x128xf32>
    %cst_24 = arith.constant 0.000000e+00 : f32
    %275 = vector.broadcast %cst_24 : f32 to vector<8x128xf32>
    %276 = arith.maximumf %274, %275 : vector<8x128xf32>
    %277 = vector.broadcast %35 : f32 to vector<8x128xf32>
    %278 = arith.mulf %132, %277 : vector<8x128xf32>
    %279 = vector.broadcast %36 : f32 to vector<8x128xf32>
    %280 = arith.mulf %136, %279 : vector<8x128xf32>
    %281 = arith.addf %278, %280 : vector<8x128xf32>
    %282 = vector.broadcast %37 : f32 to vector<8x128xf32>
    %283 = arith.mulf %140, %282 : vector<8x128xf32>
    %284 = arith.addf %281, %283 : vector<8x128xf32>
    %285 = vector.broadcast %38 : f32 to vector<8x128xf32>
    %286 = arith.mulf %144, %285 : vector<8x128xf32>
    %287 = arith.addf %284, %286 : vector<8x128xf32>
    %288 = vector.broadcast %39 : f32 to vector<8x128xf32>
    %289 = arith.mulf %148, %288 : vector<8x128xf32>
    %290 = arith.addf %287, %289 : vector<8x128xf32>
    %291 = vector.broadcast %40 : f32 to vector<8x128xf32>
    %292 = arith.mulf %152, %291 : vector<8x128xf32>
    %293 = arith.addf %290, %292 : vector<8x128xf32>
    %294 = vector.broadcast %41 : f32 to vector<8x128xf32>
    %295 = arith.mulf %156, %294 : vector<8x128xf32>
    %296 = arith.addf %293, %295 : vector<8x128xf32>
    %297 = vector.broadcast %75 : f32 to vector<8x128xf32>
    %298 = arith.addf %296, %297 : vector<8x128xf32>
    %cst_25 = arith.constant 0.000000e+00 : f32
    %299 = vector.broadcast %cst_25 : f32 to vector<8x128xf32>
    %300 = arith.maximumf %298, %299 : vector<8x128xf32>
    %301 = vector.broadcast %42 : f32 to vector<8x128xf32>
    %302 = arith.mulf %132, %301 : vector<8x128xf32>
    %303 = vector.broadcast %43 : f32 to vector<8x128xf32>
    %304 = arith.mulf %136, %303 : vector<8x128xf32>
    %305 = arith.addf %302, %304 : vector<8x128xf32>
    %306 = vector.broadcast %44 : f32 to vector<8x128xf32>
    %307 = arith.mulf %140, %306 : vector<8x128xf32>
    %308 = arith.addf %305, %307 : vector<8x128xf32>
    %309 = vector.broadcast %45 : f32 to vector<8x128xf32>
    %310 = arith.mulf %144, %309 : vector<8x128xf32>
    %311 = arith.addf %308, %310 : vector<8x128xf32>
    %312 = vector.broadcast %46 : f32 to vector<8x128xf32>
    %313 = arith.mulf %148, %312 : vector<8x128xf32>
    %314 = arith.addf %311, %313 : vector<8x128xf32>
    %315 = vector.broadcast %47 : f32 to vector<8x128xf32>
    %316 = arith.mulf %152, %315 : vector<8x128xf32>
    %317 = arith.addf %314, %316 : vector<8x128xf32>
    %318 = vector.broadcast %48 : f32 to vector<8x128xf32>
    %319 = arith.mulf %156, %318 : vector<8x128xf32>
    %320 = arith.addf %317, %319 : vector<8x128xf32>
    %321 = vector.broadcast %76 : f32 to vector<8x128xf32>
    %322 = arith.addf %320, %321 : vector<8x128xf32>
    %cst_26 = arith.constant 0.000000e+00 : f32
    %323 = vector.broadcast %cst_26 : f32 to vector<8x128xf32>
    %324 = arith.maximumf %322, %323 : vector<8x128xf32>
    %325 = vector.broadcast %49 : f32 to vector<8x128xf32>
    %326 = arith.mulf %132, %325 : vector<8x128xf32>
    %327 = vector.broadcast %50 : f32 to vector<8x128xf32>
    %328 = arith.mulf %136, %327 : vector<8x128xf32>
    %329 = arith.addf %326, %328 : vector<8x128xf32>
    %330 = vector.broadcast %51 : f32 to vector<8x128xf32>
    %331 = arith.mulf %140, %330 : vector<8x128xf32>
    %332 = arith.addf %329, %331 : vector<8x128xf32>
    %333 = vector.broadcast %52 : f32 to vector<8x128xf32>
    %334 = arith.mulf %144, %333 : vector<8x128xf32>
    %335 = arith.addf %332, %334 : vector<8x128xf32>
    %336 = vector.broadcast %53 : f32 to vector<8x128xf32>
    %337 = arith.mulf %148, %336 : vector<8x128xf32>
    %338 = arith.addf %335, %337 : vector<8x128xf32>
    %339 = vector.broadcast %54 : f32 to vector<8x128xf32>
    %340 = arith.mulf %152, %339 : vector<8x128xf32>
    %341 = arith.addf %338, %340 : vector<8x128xf32>
    %342 = vector.broadcast %55 : f32 to vector<8x128xf32>
    %343 = arith.mulf %156, %342 : vector<8x128xf32>
    %344 = arith.addf %341, %343 : vector<8x128xf32>
    %345 = vector.broadcast %77 : f32 to vector<8x128xf32>
    %346 = arith.addf %344, %345 : vector<8x128xf32>
    %cst_27 = arith.constant 0.000000e+00 : f32
    %347 = vector.broadcast %cst_27 : f32 to vector<8x128xf32>
    %348 = arith.maximumf %346, %347 : vector<8x128xf32>
    %349 = vector.broadcast %56 : f32 to vector<8x128xf32>
    %350 = arith.mulf %132, %349 : vector<8x128xf32>
    %351 = vector.broadcast %57 : f32 to vector<8x128xf32>
    %352 = arith.mulf %136, %351 : vector<8x128xf32>
    %353 = arith.addf %350, %352 : vector<8x128xf32>
    %354 = vector.broadcast %58 : f32 to vector<8x128xf32>
    %355 = arith.mulf %140, %354 : vector<8x128xf32>
    %356 = arith.addf %353, %355 : vector<8x128xf32>
    %357 = vector.broadcast %59 : f32 to vector<8x128xf32>
    %358 = arith.mulf %144, %357 : vector<8x128xf32>
    %359 = arith.addf %356, %358 : vector<8x128xf32>
    %360 = vector.broadcast %60 : f32 to vector<8x128xf32>
    %361 = arith.mulf %148, %360 : vector<8x128xf32>
    %362 = arith.addf %359, %361 : vector<8x128xf32>
    %363 = vector.broadcast %61 : f32 to vector<8x128xf32>
    %364 = arith.mulf %152, %363 : vector<8x128xf32>
    %365 = arith.addf %362, %364 : vector<8x128xf32>
    %366 = vector.broadcast %62 : f32 to vector<8x128xf32>
    %367 = arith.mulf %156, %366 : vector<8x128xf32>
    %368 = arith.addf %365, %367 : vector<8x128xf32>
    %369 = vector.broadcast %78 : f32 to vector<8x128xf32>
    %370 = arith.addf %368, %369 : vector<8x128xf32>
    %cst_28 = arith.constant 0.000000e+00 : f32
    %371 = vector.broadcast %cst_28 : f32 to vector<8x128xf32>
    %372 = arith.maximumf %370, %371 : vector<8x128xf32>
    %373 = vector.broadcast %63 : f32 to vector<8x128xf32>
    %374 = arith.mulf %132, %373 : vector<8x128xf32>
    %375 = vector.broadcast %64 : f32 to vector<8x128xf32>
    %376 = arith.mulf %136, %375 : vector<8x128xf32>
    %377 = arith.addf %374, %376 : vector<8x128xf32>
    %378 = vector.broadcast %65 : f32 to vector<8x128xf32>
    %379 = arith.mulf %140, %378 : vector<8x128xf32>
    %380 = arith.addf %377, %379 : vector<8x128xf32>
    %381 = vector.broadcast %66 : f32 to vector<8x128xf32>
    %382 = arith.mulf %144, %381 : vector<8x128xf32>
    %383 = arith.addf %380, %382 : vector<8x128xf32>
    %384 = vector.broadcast %67 : f32 to vector<8x128xf32>
    %385 = arith.mulf %148, %384 : vector<8x128xf32>
    %386 = arith.addf %383, %385 : vector<8x128xf32>
    %387 = vector.broadcast %68 : f32 to vector<8x128xf32>
    %388 = arith.mulf %152, %387 : vector<8x128xf32>
    %389 = arith.addf %386, %388 : vector<8x128xf32>
    %390 = vector.broadcast %69 : f32 to vector<8x128xf32>
    %391 = arith.mulf %156, %390 : vector<8x128xf32>
    %392 = arith.addf %389, %391 : vector<8x128xf32>
    %393 = vector.broadcast %79 : f32 to vector<8x128xf32>
    %394 = arith.addf %392, %393 : vector<8x128xf32>
    %cst_29 = arith.constant 0.000000e+00 : f32
    %395 = vector.broadcast %cst_29 : f32 to vector<8x128xf32>
    %396 = arith.maximumf %394, %395 : vector<8x128xf32>
    %397 = vector.broadcast %80 : f32 to vector<8x128xf32>
    %398 = arith.mulf %180, %397 : vector<8x128xf32>
    %399 = vector.broadcast %81 : f32 to vector<8x128xf32>
    %400 = arith.mulf %204, %399 : vector<8x128xf32>
    %401 = arith.addf %398, %400 : vector<8x128xf32>
    %402 = vector.broadcast %82 : f32 to vector<8x128xf32>
    %403 = arith.mulf %228, %402 : vector<8x128xf32>
    %404 = arith.addf %401, %403 : vector<8x128xf32>
    %405 = vector.broadcast %83 : f32 to vector<8x128xf32>
    %406 = arith.mulf %252, %405 : vector<8x128xf32>
    %407 = arith.addf %404, %406 : vector<8x128xf32>
    %408 = vector.broadcast %84 : f32 to vector<8x128xf32>
    %409 = arith.mulf %276, %408 : vector<8x128xf32>
    %410 = arith.addf %407, %409 : vector<8x128xf32>
    %411 = vector.broadcast %85 : f32 to vector<8x128xf32>
    %412 = arith.mulf %300, %411 : vector<8x128xf32>
    %413 = arith.addf %410, %412 : vector<8x128xf32>
    %414 = vector.broadcast %86 : f32 to vector<8x128xf32>
    %415 = arith.mulf %324, %414 : vector<8x128xf32>
    %416 = arith.addf %413, %415 : vector<8x128xf32>
    %417 = vector.broadcast %87 : f32 to vector<8x128xf32>
    %418 = arith.mulf %348, %417 : vector<8x128xf32>
    %419 = arith.addf %416, %418 : vector<8x128xf32>
    %420 = vector.broadcast %88 : f32 to vector<8x128xf32>
    %421 = arith.mulf %372, %420 : vector<8x128xf32>
    %422 = arith.addf %419, %421 : vector<8x128xf32>
    %423 = vector.broadcast %89 : f32 to vector<8x128xf32>
    %424 = arith.mulf %396, %423 : vector<8x128xf32>
    %425 = arith.addf %422, %424 : vector<8x128xf32>
    %426 = vector.broadcast %120 : f32 to vector<8x128xf32>
    %427 = arith.addf %425, %426 : vector<8x128xf32>
    %cst_30 = arith.constant 0.000000e+00 : f32
    %428 = vector.broadcast %cst_30 : f32 to vector<8x128xf32>
    %429 = arith.maximumf %427, %428 : vector<8x128xf32>
    %430 = vector.broadcast %90 : f32 to vector<8x128xf32>
    %431 = arith.mulf %180, %430 : vector<8x128xf32>
    %432 = vector.broadcast %91 : f32 to vector<8x128xf32>
    %433 = arith.mulf %204, %432 : vector<8x128xf32>
    %434 = arith.addf %431, %433 : vector<8x128xf32>
    %435 = vector.broadcast %92 : f32 to vector<8x128xf32>
    %436 = arith.mulf %228, %435 : vector<8x128xf32>
    %437 = arith.addf %434, %436 : vector<8x128xf32>
    %438 = vector.broadcast %93 : f32 to vector<8x128xf32>
    %439 = arith.mulf %252, %438 : vector<8x128xf32>
    %440 = arith.addf %437, %439 : vector<8x128xf32>
    %441 = vector.broadcast %94 : f32 to vector<8x128xf32>
    %442 = arith.mulf %276, %441 : vector<8x128xf32>
    %443 = arith.addf %440, %442 : vector<8x128xf32>
    %444 = vector.broadcast %95 : f32 to vector<8x128xf32>
    %445 = arith.mulf %300, %444 : vector<8x128xf32>
    %446 = arith.addf %443, %445 : vector<8x128xf32>
    %447 = vector.broadcast %96 : f32 to vector<8x128xf32>
    %448 = arith.mulf %324, %447 : vector<8x128xf32>
    %449 = arith.addf %446, %448 : vector<8x128xf32>
    %450 = vector.broadcast %97 : f32 to vector<8x128xf32>
    %451 = arith.mulf %348, %450 : vector<8x128xf32>
    %452 = arith.addf %449, %451 : vector<8x128xf32>
    %453 = vector.broadcast %98 : f32 to vector<8x128xf32>
    %454 = arith.mulf %372, %453 : vector<8x128xf32>
    %455 = arith.addf %452, %454 : vector<8x128xf32>
    %456 = vector.broadcast %99 : f32 to vector<8x128xf32>
    %457 = arith.mulf %396, %456 : vector<8x128xf32>
    %458 = arith.addf %455, %457 : vector<8x128xf32>
    %459 = vector.broadcast %121 : f32 to vector<8x128xf32>
    %460 = arith.addf %458, %459 : vector<8x128xf32>
    %cst_31 = arith.constant 0.000000e+00 : f32
    %461 = vector.broadcast %cst_31 : f32 to vector<8x128xf32>
    %462 = arith.maximumf %460, %461 : vector<8x128xf32>
    %463 = vector.broadcast %100 : f32 to vector<8x128xf32>
    %464 = arith.mulf %180, %463 : vector<8x128xf32>
    %465 = vector.broadcast %101 : f32 to vector<8x128xf32>
    %466 = arith.mulf %204, %465 : vector<8x128xf32>
    %467 = arith.addf %464, %466 : vector<8x128xf32>
    %468 = vector.broadcast %102 : f32 to vector<8x128xf32>
    %469 = arith.mulf %228, %468 : vector<8x128xf32>
    %470 = arith.addf %467, %469 : vector<8x128xf32>
    %471 = vector.broadcast %103 : f32 to vector<8x128xf32>
    %472 = arith.mulf %252, %471 : vector<8x128xf32>
    %473 = arith.addf %470, %472 : vector<8x128xf32>
    %474 = vector.broadcast %104 : f32 to vector<8x128xf32>
    %475 = arith.mulf %276, %474 : vector<8x128xf32>
    %476 = arith.addf %473, %475 : vector<8x128xf32>
    %477 = vector.broadcast %105 : f32 to vector<8x128xf32>
    %478 = arith.mulf %300, %477 : vector<8x128xf32>
    %479 = arith.addf %476, %478 : vector<8x128xf32>
    %480 = vector.broadcast %106 : f32 to vector<8x128xf32>
    %481 = arith.mulf %324, %480 : vector<8x128xf32>
    %482 = arith.addf %479, %481 : vector<8x128xf32>
    %483 = vector.broadcast %107 : f32 to vector<8x128xf32>
    %484 = arith.mulf %348, %483 : vector<8x128xf32>
    %485 = arith.addf %482, %484 : vector<8x128xf32>
    %486 = vector.broadcast %108 : f32 to vector<8x128xf32>
    %487 = arith.mulf %372, %486 : vector<8x128xf32>
    %488 = arith.addf %485, %487 : vector<8x128xf32>
    %489 = vector.broadcast %109 : f32 to vector<8x128xf32>
    %490 = arith.mulf %396, %489 : vector<8x128xf32>
    %491 = arith.addf %488, %490 : vector<8x128xf32>
    %492 = vector.broadcast %122 : f32 to vector<8x128xf32>
    %493 = arith.addf %491, %492 : vector<8x128xf32>
    %cst_32 = arith.constant 0.000000e+00 : f32
    %494 = vector.broadcast %cst_32 : f32 to vector<8x128xf32>
    %495 = arith.maximumf %493, %494 : vector<8x128xf32>
    %496 = vector.broadcast %110 : f32 to vector<8x128xf32>
    %497 = arith.mulf %180, %496 : vector<8x128xf32>
    %498 = vector.broadcast %111 : f32 to vector<8x128xf32>
    %499 = arith.mulf %204, %498 : vector<8x128xf32>
    %500 = arith.addf %497, %499 : vector<8x128xf32>
    %501 = vector.broadcast %112 : f32 to vector<8x128xf32>
    %502 = arith.mulf %228, %501 : vector<8x128xf32>
    %503 = arith.addf %500, %502 : vector<8x128xf32>
    %504 = vector.broadcast %113 : f32 to vector<8x128xf32>
    %505 = arith.mulf %252, %504 : vector<8x128xf32>
    %506 = arith.addf %503, %505 : vector<8x128xf32>
    %507 = vector.broadcast %114 : f32 to vector<8x128xf32>
    %508 = arith.mulf %276, %507 : vector<8x128xf32>
    %509 = arith.addf %506, %508 : vector<8x128xf32>
    %510 = vector.broadcast %115 : f32 to vector<8x128xf32>
    %511 = arith.mulf %300, %510 : vector<8x128xf32>
    %512 = arith.addf %509, %511 : vector<8x128xf32>
    %513 = vector.broadcast %116 : f32 to vector<8x128xf32>
    %514 = arith.mulf %324, %513 : vector<8x128xf32>
    %515 = arith.addf %512, %514 : vector<8x128xf32>
    %516 = vector.broadcast %117 : f32 to vector<8x128xf32>
    %517 = arith.mulf %348, %516 : vector<8x128xf32>
    %518 = arith.addf %515, %517 : vector<8x128xf32>
    %519 = vector.broadcast %118 : f32 to vector<8x128xf32>
    %520 = arith.mulf %372, %519 : vector<8x128xf32>
    %521 = arith.addf %518, %520 : vector<8x128xf32>
    %522 = vector.broadcast %119 : f32 to vector<8x128xf32>
    %523 = arith.mulf %396, %522 : vector<8x128xf32>
    %524 = arith.addf %521, %523 : vector<8x128xf32>
    %525 = vector.broadcast %123 : f32 to vector<8x128xf32>
    %526 = arith.addf %524, %525 : vector<8x128xf32>
    %cst_33 = arith.constant 0.000000e+00 : f32
    %527 = vector.broadcast %cst_33 : f32 to vector<8x128xf32>
    %528 = arith.maximumf %526, %527 : vector<8x128xf32>
    %529 = vector.broadcast %124 : f32 to vector<8x128xf32>
    %530 = arith.mulf %429, %529 : vector<8x128xf32>
    %531 = vector.broadcast %125 : f32 to vector<8x128xf32>
    %532 = arith.mulf %462, %531 : vector<8x128xf32>
    %533 = arith.addf %530, %532 : vector<8x128xf32>
    %534 = vector.broadcast %126 : f32 to vector<8x128xf32>
    %535 = arith.mulf %495, %534 : vector<8x128xf32>
    %536 = arith.addf %533, %535 : vector<8x128xf32>
    %537 = vector.broadcast %127 : f32 to vector<8x128xf32>
    %538 = arith.mulf %528, %537 : vector<8x128xf32>
    %539 = arith.addf %536, %538 : vector<8x128xf32>
    %540 = vector.broadcast %128 : f32 to vector<8x128xf32>
    %541 = arith.addf %539, %540 : vector<8x128xf32>
    %cst_34 = arith.constant 0.000000e+00 : f32
    %542 = vector.broadcast %cst_34 : f32 to vector<8x128xf32>
    %543 = arith.subf %542, %541 : vector<8x128xf32>
    %544 = math.exp %543 : vector<8x128xf32>
    %cst_35 = arith.constant 1.000000e+00 : f32
    %545 = vector.broadcast %cst_35 : f32 to vector<8x128xf32>
    %546 = arith.addf %545, %544 : vector<8x128xf32>
    %cst_36 = arith.constant 1.000000e+00 : f32
    %547 = vector.broadcast %cst_36 : f32 to vector<8x128xf32>
    %548 = arith.divf %547, %546 : vector<8x128xf32>
    %549 = arith.index_cast %c0_i32 : i32 to index
    %c0_37 = arith.constant 0 : index
    %c0_38 = arith.constant 0 : index
    %550 = vector.load %arg3[%549, %c0_37, %c0_38] : memref<1x8x128xf32, #tpu.memory_space<vmem>>, vector<1x8x128xf32>
    %551 = vector.shape_cast %550 : vector<1x8x128xf32> to vector<8x128xf32>
    %552 = vector.shape_cast %548 : vector<8x128xf32> to vector<1x8x128xf32>
    tpu.vector_store %arg3[%549, %c0_37, %c0_38], %552 {strides = array<i32>} : memref<1x8x128xf32, #tpu.memory_space<vmem>>, vector<1x8x128xf32>,
    %c1_i32 = arith.constant 1 : i32
    return
  }
  func.func @transform_0(%arg0: i32) -> i32 {
    %c0_i32 = arith.constant 0 : i32
    %c0_i32_0 = arith.constant 0 : i32
    return %c0_i32 : i32
  }
  func.func @transform_1(%arg0: i32) -> (i32, i32, i32, i32) {
    %c0_i32 = arith.constant 0 : i32
    %c0_i32_0 = arith.constant 0 : i32
    %c0_i32_1 = arith.constant 0 : i32
    %c0_i32_2 = arith.constant 0 : i32
    return %c0_i32, %arg0, %c0_i32_0, %c0_i32_1 : i32, i32, i32, i32
  }
  func.func @transform_2(%arg0: i32) -> (i32, i32, i32) {
    %c0_i32 = arith.constant 0 : i32
    %c0_i32_0 = arith.constant 0 : i32
    %c0_i32_1 = arith.constant 0 : i32
    return %arg0, %c0_i32, %c0_i32_0 : i32, i32, i32
  }
}

</mosaic_0001>

<llo_original>
// kernel: mlp_forward.1
$region0: #{mlp_forward.1}
  #allocation0 [shape = 'u32[]', space=smem, size = 0x4, offset = 0x4, fixed_abs, tag = 'smem constant byte address 0x4 - core index']
  #allocation1 [shape = 'u32[144,128]{1,0:T(1,128)}', space=vmem, size = 0x12000, scoped, tag = 'internal scratch']
  %s0 = inlined_call_operand.vmem [shape: f32[129], index: 0, kind: input, shape index: {}]
  %s1 = inlined_call_operand.vmem [shape: bf16[7,2,8,128], index: 1, kind: input, shape index: {}]
  %s2 = inlined_call_operand.hbm [shape: f32[2,8,128], index: 2, kind: output, shape index: {}]
  %s3 = sld [smem:[#allocation0]]
  $region86: #{mlp_forward.1} parent=0
    _
  %s5 = ssub.s32 1, %s3
  %s6 = scalar_select 0, %s5, %s3
  $region1: #{mlp_forward.1} parent=0
    #allocation2 [shape = 'u8[1024]{0}', space=smem, size = 0x400, scoped, tag = 'input window, operand 0, single buffered']
    #allocation3 [shape = 's32[2]{0}', space=sflag, size = 0x8, scoped, tag = 'scoped memory for mlp_forward.1']
    #allocation4 [shape = 's32[2]{0}', space=sflag, size = 0x8, scoped, tag = 'scoped memory for mlp_forward.1']
    #allocation5 [shape = 'u8[28672]{0}', space=vmem, size = 0x7000, scoped, tag = 'input window, operand 1']
    #allocation6 [shape = 'u8[8192]{0}', space=vmem, size = 0x2000, scoped, tag = 'output window, operand 0']
    %7 = vsyncpa [#allocation4], 0
    %8 = vsyncpa [#allocation3], 0
    %s9 = scalar_lea.sflag [#allocation3], 1
    %10 = vsyncpa %s9, 0
    loop: start=0, step=1, limit=4
    $region2: #{mlp_forward.1} parent=1 // loop_pre_header
      _
    $region3: #{mlp_forward.1} parent=1 // loop_header
      %s12 = sphi 0, %s16
      %p13 = scmp.ge.s32.totalorder %s12, 4
      %s20 = sphi 0, %s20
      %s22 = sphi 0, %s20
      %s23 = sphi 0, %s22
      %s37 = sphi 0, %s23
      %s43 = sphi 0, %s45
      %s46 = sphi 0, %s43
      %s47 = sphi 0, %s46
      %s63 = sphi 0, %s47
      %s69 = sphi 0, %s71
      %s72 = sphi 0, %s69
      %s73 = sphi 0, %s72
      %s89 = sphi 0, %s73
    $region4: #{mlp_forward.1} parent=1 // loop_header_branch
      %15 = sbr.rel (%p13) target = $region8
    $region5: #{mlp_forward.1} parent=1 // loop_body
      %s17 = ssub.s32 %s12, 1
      %s18 = ssub.s32 %s12, 2
      %s19 = sadd.s32 %s12, 1
      %s21 = sadd.s32 %s20, 1
      %p24 = scmp.eq.s32.totalorder %s12, 1
      %p25 = scmp.ne.s32.totalorder %s20, %s22
      %p26 = scmp.eq.s32.totalorder %s12, 0
      %p27 = por %p25, %p26
      %p28 = scmp.ne.s32.totalorder %s20, %s22
      %p29 = scmp.eq.s32.totalorder %s17, 1
      %p30 = por %p28, %p29
      %p31 = scmp.ne.s32.totalorder %s22, %s23
      %p32 = scmp.eq.s32.totalorder %s17, 0
      %p33 = por %p31, %p32
      %p34 = scmp.ne.s32.totalorder %s22, %s23
      %p35 = scmp.eq.s32.totalorder %s18, 1
      %p36 = por %p34, %p35
      %p38 = scmp.ne.s32.totalorder %s23, %s37
      %p39 = scmp.eq.s32.totalorder %s18, 0
      %p40 = por %p38, %p39
      %s41 = ssub.s32 %s12, %s19
      %p42 = scmp.eq.s32.totalorder %s41, 0
      %s44 = sadd.s32 %s43, 1
      %s45 = scalar_select %p42, %s43, %s44
      %p48 = pneg %p42
      %p49 = scmp.eq.s32.totalorder %s12, 1
      %p50 = por %p48, %p49
      %p51 = scmp.ne.s32.totalorder %s43, %s46
      %p52 = scmp.eq.s32.totalorder %s12, 0
      %p53 = por %p51, %p52
      %p54 = scmp.ne.s32.totalorder %s43, %s46
      %p55 = scmp.eq.s32.totalorder %s17, 1
      %p56 = por %p54, %p55
      %p57 = scmp.ne.s32.totalorder %s46, %s47
      %p58 = scmp.eq.s32.totalorder %s17, 0
      %p59 = por %p57, %p58
      %p60 = scmp.ne.s32.totalorder %s46, %s47
      %p61 = scmp.eq.s32.totalorder %s18, 1
      %p62 = por %p60, %p61
      %p64 = scmp.ne.s32.totalorder %s47, %s63
      %p65 = scmp.eq.s32.totalorder %s18, 0
      %p66 = por %p64, %p65
      %s67 = ssub.s32 %s12, %s19
      %p68 = scmp.eq.s32.totalorder %s67, 0
      %s70 = sadd.s32 %s69, 1
      %s71 = scalar_select %p68, %s69, %s70
      %p74 = pneg %p68
      %p75 = scmp.eq.s32.totalorder %s12, 1
      %p76 = por %p74, %p75
      %p77 = scmp.ne.s32.totalorder %s69, %s72
      %p78 = scmp.eq.s32.totalorder %s12, 0
      %p79 = por %p77, %p78
      %p80 = scmp.ne.s32.totalorder %s69, %s72
      %p81 = scmp.eq.s32.totalorder %s17, 1
      %p82 = por %p80, %p81
      %p83 = scmp.ne.s32.totalorder %s72, %s73
      %p84 = scmp.eq.s32.totalorder %s17, 0
      %p85 = por %p83, %p84
      %p86 = scmp.ne.s32.totalorder %s72, %s73
      %p87 = scmp.eq.s32.totalorder %s18, 1
      %p88 = por %p86, %p87
      %p90 = scmp.ne.s32.totalorder %s73, %s89
      %p91 = scmp.eq.s32.totalorder %s18, 0
      %p92 = por %p90, %p91
      %p93 = scmp.le.s32.totalorder 1, %s12
      %p94 = scmp.lt.s32.totalorder %s12, 3
      %p95 = pnand %p93, %p94
      %p96 = pneg %p95
      // Predicated region
      $region9: #{mlp_forward.1} parent=5 // pred_check
        _
      $region10: #{mlp_forward.1} parent=5 // pred_check_branch
        %98 = sbr.rel (%p95) target = $region12
      $region11: #{mlp_forward.1} parent=5 // pred_region
        %s99 = ssub.s32 %s12, 1
        // Predicated region
        $region13: #{mlp_forward.1} parent=11 // pred_check
          %p100 = pneg %p33
        $region14: #{mlp_forward.1} parent=11 // pred_check_branch
          %102 = sbr.rel (%p100) target = $region16
        $region15: #{mlp_forward.1} parent=11 // pred_region
          %s104 = ssub.s32 32, 32
          %105 = vsyncadd [#allocation4], %s104
          %s107 = sshll.u32 %s0, 4
          %s108 = int_to_ptr.vmem [resolvable:$true] %s107
          %110 = dma.vmem_to_smem %s108, 32, [#allocation2], [#allocation4]
        $region16: #{mlp_forward.1} parent=11 // pred_fallthru
          _
      $region12: #{mlp_forward.1} parent=5 // pred_fallthru
        _
      %p111 = scmp.lt.s32.totalorder %s12, 2
      // Predicated region
      $region17: #{mlp_forward.1} parent=5 // pred_check
        %p112 = pneg %p111
      $region18: #{mlp_forward.1} parent=5 // pred_check_branch
        %114 = sbr.rel (%p112) target = $region20
      $region19: #{mlp_forward.1} parent=5 // pred_region
        // Predicated region
        $region21: #{mlp_forward.1} parent=19 // pred_check
          %p115 = pneg %p53
        $region22: #{mlp_forward.1} parent=19 // pred_check_branch
          %117 = sbr.rel (%p115) target = $region24
        $region23: #{mlp_forward.1} parent=19 // pred_region
          %s118 = sand.u32 %s43, 1
          %s119 = sand.u32 %s43, 1
          %s120 = smul.addr %s119, 28
          %s121 = scalar_lea.vmem [#allocation5], %s120
          %s122 = smul.addr %s12, 4
          %s123 = scalar_lea.vmem %s1, %s122
          // Predicated region
          $region25: #{mlp_forward.1} parent=23 // pred_check
            _
          $region26: #{mlp_forward.1} parent=23 // pred_check_branch
            %125 = sbr.rel (0) target = $region28
          $region27: #{mlp_forward.1} parent=23 // pred_region
            // Predicated region
            $region29: #{mlp_forward.1} parent=27 // pred_check
              _
            $region30: #{mlp_forward.1} parent=27 // pred_check_branch
              %127 = sbr.rel target = $region32
            $region31: #{mlp_forward.1} parent=27 // pred_region
              // Predicated region
              $region44: #{mlp_forward.1} parent=31 // pred_check
                _
              $region45: #{mlp_forward.1} parent=31 // pred_check_branch
                %154 = sbr.rel (0) target = $region47
              $region46: #{mlp_forward.1} parent=31 // pred_region
                loop: start=0, step=1, limit=1
                $region48: #{mlp_forward.1} parent=46 // loop_pre_header
                  _
                $region49: #{mlp_forward.1} parent=46 // loop_header
                  %s156 = sphi 0, %s160
                  %p157 = scmp.ge.s32.totalorder %s156, 1
                  %s161 = sphi %s123, %s123
                  %s162 = sphi %s121, %s121
                $region50: #{mlp_forward.1} parent=46 // loop_header_branch
                  %159 = sbr.rel (%p157) target = $region54
                $region51: #{mlp_forward.1} parent=46 // loop_body
                  _
                $region52: #{mlp_forward.1} parent=46 // loop_footer
                  %s160 = sadd.s32 1, %s156
                $region53: #{mlp_forward.1} parent=46 // loop_footer_branch
                  %155 = sbr.rel target = $region49
                $region54: #{mlp_forward.1} parent=46 // loop_exit
                  _
                loop: start=0, step=1, limit=1
                $region55: #{mlp_forward.1} parent=46 // loop_pre_header
                  _
                $region56: #{mlp_forward.1} parent=46 // loop_header
                  %s165 = sphi 0, %s169
                  %p166 = scmp.ge.s32.totalorder %s165, 1
                  %s170 = sphi %s123, %s123
                  %s171 = sphi %s121, %s121
                $region57: #{mlp_forward.1} parent=46 // loop_header_branch
                  %168 = sbr.rel (%p166) target = $region61
                $region58: #{mlp_forward.1} parent=46 // loop_body
                  %v172 = vld [vmem:[%s170] sm:$0xf]
                  %173 = vst [vmem:[%s171] sm:$0xf] %v172
                  %v174 = vld [vmem:[%s170 + $0x8] sm:$0xf]
                  %175 = vst [vmem:[%s171 + $0x4] sm:$0xf] %v174
                  %v176 = vld [vmem:[%s170 + $0x10] sm:$0xf]
                  %177 = vst [vmem:[%s171 + $0x8] sm:$0xf] %v176
                  %v178 = vld [vmem:[%s170 + $0x18] sm:$0xf]
                  %179 = vst [vmem:[%s171 + $0xc] sm:$0xf] %v178
                  %v180 = vld [vmem:[%s170 + $0x20] sm:$0xf]
                  %181 = vst [vmem:[%s171 + $0x10] sm:$0xf] %v180
                  %v182 = vld [vmem:[%s170 + $0x28] sm:$0xf]
                  %183 = vst [vmem:[%s171 + $0x14] sm:$0xf] %v182
                  %v184 = vld [vmem:[%s170 + $0x30] sm:$0xf]
                  %185 = vst [vmem:[%s171 + $0x18] sm:$0xf] %v184
                $region59: #{mlp_forward.1} parent=46 // loop_footer
                  %s169 = sadd.s32 1, %s165
                $region60: #{mlp_forward.1} parent=46 // loop_footer_branch
                  %164 = sbr.rel target = $region56
                $region61: #{mlp_forward.1} parent=46 // loop_exit
                  _
              $region47: #{mlp_forward.1} parent=31 // pred_fallthru
                _
            $region32: #{mlp_forward.1} parent=27 // pred_fallthru
              _
            // Predicated region
            $region33: #{mlp_forward.1} parent=27 // pred_check
              _
            $region34: #{mlp_forward.1} parent=27 // pred_check_branch
              %129 = sbr.rel (0) target = $region36
            $region35: #{mlp_forward.1} parent=27 // pred_region
              loop: start=0, step=1, limit=1
              $region37: #{mlp_forward.1} parent=35 // loop_pre_header
                _
              $region38: #{mlp_forward.1} parent=35 // loop_header
                %s132 = sphi 0, %s136
                %p133 = scmp.ge.s32.totalorder %s132, 1
                %s137 = sphi %s123, %s123
                %s138 = sphi %s121, %s121
              $region39: #{mlp_forward.1} parent=35 // loop_header_branch
                %135 = sbr.rel (%p133) target = $region43
              $region40: #{mlp_forward.1} parent=35 // loop_body
                %v139 = vld [vmem:[%s137] sm:$0xf]
                %140 = vst [vmem:[%s138] sm:$0xf] %v139
                %v141 = vld [vmem:[%s137 + $0x8] sm:$0xf]
                %142 = vst [vmem:[%s138 + $0x4] sm:$0xf] %v141
                %v143 = vld [vmem:[%s137 + $0x10] sm:$0xf]
                %144 = vst [vmem:[%s138 + $0x8] sm:$0xf] %v143
                %v145 = vld [vmem:[%s137 + $0x18] sm:$0xf]
                %146 = vst [vmem:[%s138 + $0xc] sm:$0xf] %v145
                %v147 = vld [vmem:[%s137 + $0x20] sm:$0xf]
                %148 = vst [vmem:[%s138 + $0x10] sm:$0xf] %v147
                %v149 = vld [vmem:[%s137 + $0x28] sm:$0xf]
                %150 = vst [vmem:[%s138 + $0x14] sm:$0xf] %v149
                %v151 = vld [vmem:[%s137 + $0x30] sm:$0xf]
                %152 = vst [vmem:[%s138 + $0x18] sm:$0xf] %v151
              $region41: #{mlp_forward.1} parent=35 // loop_footer
                %s136 = sadd.s32 1, %s132
              $region42: #{mlp_forward.1} parent=35 // loop_footer_branch
                %131 = sbr.rel target = $region38
              $region43: #{mlp_forward.1} parent=35 // loop_exit
                _
            $region36: #{mlp_forward.1} parent=27 // pred_fallthru
              _
          $region28: #{mlp_forward.1} parent=23 // pred_fallthru
            _
          %186 = vnop
        $region24: #{mlp_forward.1} parent=19 // pred_fallthru
          _
      $region20: #{mlp_forward.1} parent=5 // pred_fallthru
        _
      %p187 = scmp.le.s32.totalorder 1, %s12
      %p188 = scmp.lt.s32.totalorder %s12, 3
      %p189 = pnand %p187, %p188
      %p190 = pneg %p189
      // Predicated region
      $region62: #{mlp_forward.1} parent=5 // pred_check
        _
      $region63: #{mlp_forward.1} parent=5 // pred_check_branch
        %192 = sbr.rel (%p189) target = $region65
      $region64: #{mlp_forward.1} parent=5 // pred_region
        %s193 = ssub.s32 %s12, 1
        // Predicated region
        $region66: #{mlp_forward.1} parent=64 // pred_check
          %p194 = pneg %p33
        $region67: #{mlp_forward.1} parent=64 // pred_check_branch
          %196 = sbr.rel (%p194) target = $region69
        $region68: #{mlp_forward.1} parent=64 // pred_region
          %197 = dma.done [#allocation4], 32
        $region69: #{mlp_forward.1} parent=64 // pred_fallthru
          _
        %s198 = sand.u32 %s46, 1
        %s199 = sand.u32 %s46, 1
        %s200 = smul.addr %s199, 28
        %s201 = scalar_lea.vmem [#allocation5], %s200
        // Predicated region
        $region70: #{mlp_forward.1} parent=64 // pred_check
          %p202 = pneg %p59
        $region71: #{mlp_forward.1} parent=64 // pred_check_branch
          %204 = sbr.rel (%p202) target = $region73
        $region72: #{mlp_forward.1} parent=64 // pred_region
          _
        $region73: #{mlp_forward.1} parent=64 // pred_fallthru
          _
        %205 = sfence
        %p206 = pneg %p33
        %p207 = pneg %p30
        %s208 = sand.u32 %s46, 1
        %s209 = sand.u32 %s46, 1
        %s210 = smul.addr %s209, 28
        %s211 = scalar_lea.vmem [#allocation5], %s210
        %p212 = pneg %p59
        %p213 = pneg %p56
        %p214 = pneg %p85
        %p215 = pneg %p82
        %s216 = sand.u32 %s72, 1
        %s217 = scalar_lea.sflag [#allocation3], %s216
        %s218 = sand.u32 %s72, 1
        %s219 = smul.addr %s218, 8
        %s220 = scalar_lea.vmem [#allocation6], %s219
        %s221 = sld [smem:[#allocation2]]
        %s222 = sld [smem:[#allocation2 + $0x1]]
        %s223 = sld [smem:[#allocation2 + $0x2]]
        %s224 = sld [smem:[#allocation2 + $0x3]]
        %s225 = sld [smem:[#allocation2 + $0x4]]
        %s226 = sld [smem:[#allocation2 + $0x5]]
        %s227 = sld [smem:[#allocation2 + $0x6]]
        %s228 = sld [smem:[#allocation2 + $0x7]]
        %s229 = sld [smem:[#allocation2 + $0x8]]
        %s230 = sld [smem:[#allocation2 + $0x9]]
        %s231 = sld [smem:[#allocation2 + $0xa]]
        %s232 = sld [smem:[#allocation2 + $0xb]]
        %s233 = sld [smem:[#allocation2 + $0xc]]
        %s234 = sld [smem:[#allocation2 + $0xd]]
        %s235 = sld [smem:[#allocation2 + $0xe]]
        %s236 = sld [smem:[#allocation2 + $0xf]]
        %s237 = sld [smem:[#allocation2 + $0x10]]
        %s238 = sld [smem:[#allocation2 + $0x11]]
        %s239 = sld [smem:[#allocation2 + $0x12]]
        %s240 = sld [smem:[#allocation2 + $0x13]]
        %s241 = sld [smem:[#allocation2 + $0x14]]
        %s242 = sld [smem:[#allocation2 + $0x15]]
        %s243 = sld [smem:[#allocation2 + $0x16]]
        %s244 = sld [smem:[#allocation2 + $0x17]]
        %s245 = sld [smem:[#allocation2 + $0x18]]
        %s246 = sld [smem:[#allocation2 + $0x19]]
        %s247 = sld [smem:[#allocation2 + $0x1a]]
        %s248 = sld [smem:[#allocation2 + $0x1b]]
        %s249 = sld [smem:[#allocation2 + $0x1c]]
        %s250 = sld [smem:[#allocation2 + $0x1d]]
        %s251 = sld [smem:[#allocation2 + $0x1e]]
        %s252 = sld [smem:[#allocation2 + $0x1f]]
        %s253 = sld [smem:[#allocation2 + $0x20]]
        %s254 = sld [smem:[#allocation2 + $0x21]]
        %s255 = sld [smem:[#allocation2 + $0x22]]
        %s256 = sld [smem:[#allocation2 + $0x23]]
        %s257 = sld [smem:[#allocation2 + $0x24]]
        %s258 = sld [smem:[#allocation2 + $0x25]]
        %s259 = sld [smem:[#allocation2 + $0x26]]
        %s260 = sld [smem:[#allocation2 + $0x27]]
        %s261 = sld [smem:[#allocation2 + $0x28]]
        %s262 = sld [smem:[#allocation2 + $0x29]]
        %s263 = sld [smem:[#allocation2 + $0x2a]]
        %s264 = sld [smem:[#allocation2 + $0x2b]]
        %s265 = sld [smem:[#allocation2 + $0x2c]]
        %s266 = sld [smem:[#allocation2 + $0x2d]]
        %s267 = sld [smem:[#allocation2 + $0x2e]]
        %s268 = sld [smem:[#allocation2 + $0x2f]]
        %s269 = sld [smem:[#allocation2 + $0x30]]
        %s270 = sld [smem:[#allocation2 + $0x31]]
        %s271 = sld [smem:[#allocation2 + $0x32]]
        %s272 = sld [smem:[#allocation2 + $0x33]]
        %s273 = sld [smem:[#allocation2 + $0x34]]
        %s274 = sld [smem:[#allocation2 + $0x35]]
        %s275 = sld [smem:[#allocation2 + $0x36]]
        %s276 = sld [smem:[#allocation2 + $0x37]]
        %s277 = sld [smem:[#allocation2 + $0x38]]
        %s278 = sld [smem:[#allocation2 + $0x39]]
        %s279 = sld [smem:[#allocation2 + $0x3a]]
        %s280 = sld [smem:[#allocation2 + $0x3b]]
        %s281 = sld [smem:[#allocation2 + $0x3c]]
        %s282 = sld [smem:[#allocation2 + $0x3d]]
        %s283 = sld [smem:[#allocation2 + $0x3e]]
        %s284 = sld [smem:[#allocation2 + $0x3f]]
        %s285 = sld [smem:[#allocation2 + $0x40]]
        %s286 = sld [smem:[#allocation2 + $0x41]]
        %s287 = sld [smem:[#allocation2 + $0x42]]
        %s288 = sld [smem:[#allocation2 + $0x43]]
        %s289 = sld [smem:[#allocation2 + $0x44]]
        %s290 = sld [smem:[#allocation2 + $0x45]]
        %s291 = sld [smem:[#allocation2 + $0x46]]
        %s292 = sld [smem:[#allocation2 + $0x47]]
        %s293 = sld [smem:[#allocation2 + $0x48]]
        %s294 = sld [smem:[#allocation2 + $0x49]]
        %s295 = sld [smem:[#allocation2 + $0x4a]]
        %s296 = sld [smem:[#allocation2 + $0x4b]]
        %s297 = sld [smem:[#allocation2 + $0x4c]]
        %s298 = sld [smem:[#allocation2 + $0x4d]]
        %s299 = sld [smem:[#allocation2 + $0x4e]]
        %s300 = sld [smem:[#allocation2 + $0x4f]]
        %s301 = sld [smem:[#allocation2 + $0x50]]
        %s302 = sld [smem:[#allocation2 + $0x51]]
        %s303 = sld [smem:[#allocation2 + $0x52]]
        %s304 = sld [smem:[#allocation2 + $0x53]]
        %s305 = sld [smem:[#allocation2 + $0x54]]
        %s306 = sld [smem:[#allocation2 + $0x55]]
        %s307 = sld [smem:[#allocation2 + $0x56]]
        %s308 = sld [smem:[#allocation2 + $0x57]]
        %s309 = sld [smem:[#allocation2 + $0x58]]
        %s310 = sld [smem:[#allocation2 + $0x59]]
        %s311 = sld [smem:[#allocation2 + $0x5a]]
        %s312 = sld [smem:[#allocation2 + $0x5b]]
        %s313 = sld [smem:[#allocation2 + $0x5c]]
        %s314 = sld [smem:[#allocation2 + $0x5d]]
        %s315 = sld [smem:[#allocation2 + $0x5e]]
        %s316 = sld [smem:[#allocation2 + $0x5f]]
        %s317 = sld [smem:[#allocation2 + $0x60]]
        %s318 = sld [smem:[#allocation2 + $0x61]]
        %s319 = sld [smem:[#allocation2 + $0x62]]
        %s320 = sld [smem:[#allocation2 + $0x63]]
        %s321 = sld [smem:[#allocation2 + $0x64]]
        %s322 = sld [smem:[#allocation2 + $0x65]]
        %s323 = sld [smem:[#allocation2 + $0x66]]
        %s324 = sld [smem:[#allocation2 + $0x67]]
        %s325 = sld [smem:[#allocation2 + $0x68]]
        %s326 = sld [smem:[#allocation2 + $0x69]]
        %s327 = sld [smem:[#allocation2 + $0x6a]]
        %s328 = sld [smem:[#allocation2 + $0x6b]]
        %s329 = sld [smem:[#allocation2 + $0x6c]]
        %s330 = sld [smem:[#allocation2 + $0x6d]]
        %s331 = sld [smem:[#allocation2 + $0x6e]]
        %s332 = sld [smem:[#allocation2 + $0x6f]]
        %s333 = sld [smem:[#allocation2 + $0x70]]
        %s334 = sld [smem:[#allocation2 + $0x71]]
        %s335 = sld [smem:[#allocation2 + $0x72]]
        %s336 = sld [smem:[#allocation2 + $0x73]]
        %s337 = sld [smem:[#allocation2 + $0x74]]
        %s338 = sld [smem:[#allocation2 + $0x75]]
        %s339 = sld [smem:[#allocation2 + $0x76]]
        %s340 = sld [smem:[#allocation2 + $0x77]]
        %s341 = sld [smem:[#allocation2 + $0x78]]
        %s342 = sld [smem:[#allocation2 + $0x79]]
        %s343 = sld [smem:[#allocation2 + $0x7a]]
        %s344 = sld [smem:[#allocation2 + $0x7b]]
        %s345 = sld [smem:[#allocation2 + $0x7c]]
        %s346 = sld [smem:[#allocation2 + $0x7d]]
        %s347 = sld [smem:[#allocation2 + $0x7e]]
        %s348 = sld [smem:[#allocation2 + $0x7f]]
        %s349 = sld [smem:[#allocation2 + $0x80]]
        %v350 = vld [vmem:[%s201] sm:$0xf]
        %v351 = vunpack.c.l.bf16 %v350
        %s352 = scalar_lea.vmem %s201, 4 [#allocation5]
        %v353 = vld [vmem:[%s352] sm:$0xf]
        %v354 = vunpack.c.l.bf16 %v353
        %s355 = scalar_lea.vmem %s201, 8 [#allocation5]
        %v356 = vld [vmem:[%s355] sm:$0xf]
        %v357 = vunpack.c.l.bf16 %v356
        %s358 = scalar_lea.vmem %s201, 12 [#allocation5]
        %v359 = vld [vmem:[%s358] sm:$0xf]
        %v360 = vunpack.c.l.bf16 %v359
        %s361 = scalar_lea.vmem %s201, 16 [#allocation5]
        %v362 = vld [vmem:[%s361] sm:$0xf]
        %v363 = vunpack.c.l.bf16 %v362
        %s364 = scalar_lea.vmem %s201, 20 [#allocation5]
        %v365 = vld [vmem:[%s364] sm:$0xf]
        %v366 = vunpack.c.l.bf16 %v365
        %s367 = scalar_lea.vmem %s201, 24 [#allocation5]
        %v368 = vld [vmem:[%s367] sm:$0xf]
        %v369 = vunpack.c.l.bf16 %v368
        %v370 = vstv %s221
        %v371 = vmul.f32 %v351, %v370
        %v372 = vstv %s222
        %v373 = vmul.f32 %v354, %v372
        %v374 = vadd.f32 %v371, %v373
        %v375 = vstv %s223
        %v376 = vmul.f32 %v357, %v375
        %v377 = vadd.f32 %v374, %v376
        %v378 = vstv %s224
        %v379 = vmul.f32 %v360, %v378
        %v380 = vadd.f32 %v377, %v379
        %v381 = vstv %s225
        %v382 = vmul.f32 %v363, %v381
        %v383 = vadd.f32 %v380, %v382
        %v384 = vstv %s226
        %v385 = vmul.f32 %v366, %v384
        %v386 = vadd.f32 %v383, %v385
        %v387 = vstv %s227
        %v388 = vmul.f32 %v369, %v387
        %v389 = vadd.f32 %v386, %v388
        %v390 = vstv %s291
        %v391 = vadd.f32 %v389, %v390
        %v392 = vmax.f32 %v391, 0.0
        %v393 = vstv %s228
        %v394 = vmul.f32 %v351, %v393
        %v395 = vstv %s229
        %v396 = vmul.f32 %v354, %v395
        %v397 = vadd.f32 %v394, %v396
        %v398 = vstv %s230
        %v399 = vmul.f32 %v357, %v398
        %v400 = vadd.f32 %v397, %v399
        %v401 = vstv %s231
        %v402 = vmul.f32 %v360, %v401
        %v403 = vadd.f32 %v400, %v402
        %v404 = vstv %s232
        %v405 = vmul.f32 %v363, %v404
        %v406 = vadd.f32 %v403, %v405
        %v407 = vstv %s233
        %v408 = vmul.f32 %v366, %v407
        %v409 = vadd.f32 %v406, %v408
        %v410 = vstv %s234
        %v411 = vmul.f32 %v369, %v410
        %v412 = vadd.f32 %v409, %v411
        %v413 = vstv %s292
        %v414 = vadd.f32 %v412, %v413
        %v415 = vmax.f32 %v414, 0.0
        %v416 = vstv %s235
        %v417 = vmul.f32 %v351, %v416
        %v418 = vstv %s236
        %v419 = vmul.f32 %v354, %v418
        %v420 = vadd.f32 %v417, %v419
        %v421 = vstv %s237
        %v422 = vmul.f32 %v357, %v421
        %v423 = vadd.f32 %v420, %v422
        %v424 = vstv %s238
        %v425 = vmul.f32 %v360, %v424
        %v426 = vadd.f32 %v423, %v425
        %v427 = vstv %s239
        %v428 = vmul.f32 %v363, %v427
        %v429 = vadd.f32 %v426, %v428
        %v430 = vstv %s240
        %v431 = vmul.f32 %v366, %v430
        %v432 = vadd.f32 %v429, %v431
        %v433 = vstv %s241
        %v434 = vmul.f32 %v369, %v433
        %v435 = vadd.f32 %v432, %v434
        %v436 = vstv %s293
        %v437 = vadd.f32 %v435, %v436
        %v438 = vmax.f32 %v437, 0.0
        %v439 = vstv %s242
        %v440 = vmul.f32 %v351, %v439
        %v441 = vstv %s243
        %v442 = vmul.f32 %v354, %v441
        %v443 = vadd.f32 %v440, %v442
        %v444 = vstv %s244
        %v445 = vmul.f32 %v357, %v444
        %v446 = vadd.f32 %v443, %v445
        %v447 = vstv %s245
        %v448 = vmul.f32 %v360, %v447
        %v449 = vadd.f32 %v446, %v448
        %v450 = vstv %s246
        %v451 = vmul.f32 %v363, %v450
        %v452 = vadd.f32 %v449, %v451
        %v453 = vstv %s247
        %v454 = vmul.f32 %v366, %v453
        %v455 = vadd.f32 %v452, %v454
        %v456 = vstv %s248
        %v457 = vmul.f32 %v369, %v456
        %v458 = vadd.f32 %v455, %v457
        %v459 = vstv %s294
        %v460 = vadd.f32 %v458, %v459
        %v461 = vmax.f32 %v460, 0.0
        %v462 = vstv %s249
        %v463 = vmul.f32 %v351, %v462
        %v464 = vstv %s250
        %v465 = vmul.f32 %v354, %v464
        %v466 = vadd.f32 %v463, %v465
        %v467 = vstv %s251
        %v468 = vmul.f32 %v357, %v467
        %v469 = vadd.f32 %v466, %v468
        %v470 = vstv %s252
        %v471 = vmul.f32 %v360, %v470
        %v472 = vadd.f32 %v469, %v471
        %v473 = vstv %s253
        %v474 = vmul.f32 %v363, %v473
        %v475 = vadd.f32 %v472, %v474
        %v476 = vstv %s254
        %v477 = vmul.f32 %v366, %v476
        %v478 = vadd.f32 %v475, %v477
        %v479 = vstv %s255
        %v480 = vmul.f32 %v369, %v479
        %v481 = vadd.f32 %v478, %v480
        %v482 = vstv %s295
        %v483 = vadd.f32 %v481, %v482
        %v484 = vmax.f32 %v483, 0.0
        %v485 = vstv %s256
        %v486 = vmul.f32 %v351, %v485
        %v487 = vstv %s257
        %v488 = vmul.f32 %v354, %v487
        %v489 = vadd.f32 %v486, %v488
        %v490 = vstv %s258
        %v491 = vmul.f32 %v357, %v490
        %v492 = vadd.f32 %v489, %v491
        %v493 = vstv %s259
        %v494 = vmul.f32 %v360, %v493
        %v495 = vadd.f32 %v492, %v494
        %v496 = vstv %s260
        %v497 = vmul.f32 %v363, %v496
        %v498 = vadd.f32 %v495, %v497
        %v499 = vstv %s261
        %v500 = vmul.f32 %v366, %v499
        %v501 = vadd.f32 %v498, %v500
        %v502 = vstv %s262
        %v503 = vmul.f32 %v369, %v502
        %v504 = vadd.f32 %v501, %v503
        %v505 = vstv %s296
        %v506 = vadd.f32 %v504, %v505
        %v507 = vmax.f32 %v506, 0.0
        %v508 = vstv %s263
        %v509 = vmul.f32 %v351, %v508
        %v510 = vstv %s264
        %v511 = vmul.f32 %v354, %v510
        %v512 = vadd.f32 %v509, %v511
        %v513 = vstv %s265
        %v514 = vmul.f32 %v357, %v513
        %v515 = vadd.f32 %v512, %v514
        %v516 = vstv %s266
        %v517 = vmul.f32 %v360, %v516
        %v518 = vadd.f32 %v515, %v517
        %v519 = vstv %s267
        %v520 = vmul.f32 %v363, %v519
        %v521 = vadd.f32 %v518, %v520
        %v522 = vstv %s268
        %v523 = vmul.f32 %v366, %v522
        %v524 = vadd.f32 %v521, %v523
        %v525 = vstv %s269
        %v526 = vmul.f32 %v369, %v525
        %v527 = vadd.f32 %v524, %v526
        %v528 = vstv %s297
        %v529 = vadd.f32 %v527, %v528
        %v530 = vmax.f32 %v529, 0.0
        %v531 = vstv %s270
        %v532 = vmul.f32 %v351, %v531
        %v533 = vstv %s271
        %v534 = vmul.f32 %v354, %v533
        %v535 = vadd.f32 %v532, %v534
        %v536 = vstv %s272
        %v537 = vmul.f32 %v357, %v536
        %v538 = vadd.f32 %v535, %v537
        %v539 = vstv %s273
        %v540 = vmul.f32 %v360, %v539
        %v541 = vadd.f32 %v538, %v540
        %v542 = vstv %s274
        %v543 = vmul.f32 %v363, %v542
        %v544 = vadd.f32 %v541, %v543
        %v545 = vstv %s275
        %v546 = vmul.f32 %v366, %v545
        %v547 = vadd.f32 %v544, %v546
        %v548 = vstv %s276
        %v549 = vmul.f32 %v369, %v548
        %v550 = vadd.f32 %v547, %v549
        %v551 = vstv %s298
        %v552 = vadd.f32 %v550, %v551
        %v553 = vmax.f32 %v552, 0.0
        %v554 = vstv %s277
        %v555 = vmul.f32 %v351, %v554
        %v556 = vstv %s278
        %v557 = vmul.f32 %v354, %v556
        %v558 = vadd.f32 %v555, %v557
        %v559 = vstv %s279
        %v560 = vmul.f32 %v357, %v559
        %v561 = vadd.f32 %v558, %v560
        %v562 = vstv %s280
        %v563 = vmul.f32 %v360, %v562
        %v564 = vadd.f32 %v561, %v563
        %v565 = vstv %s281
        %v566 = vmul.f32 %v363, %v565
        %v567 = vadd.f32 %v564, %v566
        %v568 = vstv %s282
        %v569 = vmul.f32 %v366, %v568
        %v570 = vadd.f32 %v567, %v569
        %v571 = vstv %s283
        %v572 = vmul.f32 %v369, %v571
        %v573 = vadd.f32 %v570, %v572
        %v574 = vstv %s299
        %v575 = vadd.f32 %v573, %v574
        %v576 = vmax.f32 %v575, 0.0
        %v577 = vstv %s284
        %v578 = vmul.f32 %v351, %v577
        %v579 = vstv %s285
        %v580 = vmul.f32 %v354, %v579
        %v581 = vadd.f32 %v578, %v580
        %v582 = vstv %s286
        %v583 = vmul.f32 %v357, %v582
        %v584 = vadd.f32 %v581, %v583
        %v585 = vstv %s287
        %v586 = vmul.f32 %v360, %v585
        %v587 = vadd.f32 %v584, %v586
        %v588 = vstv %s288
        %v589 = vmul.f32 %v363, %v588
        %v590 = vadd.f32 %v587, %v589
        %v591 = vstv %s289
        %v592 = vmul.f32 %v366, %v591
        %v593 = vadd.f32 %v590, %v592
        %v594 = vstv %s290
        %v595 = vmul.f32 %v369, %v594
        %v596 = vadd.f32 %v593, %v595
        %v597 = vstv %s300
        %v598 = vadd.f32 %v596, %v597
        %v599 = vmax.f32 %v598, 0.0
        %v600 = vstv %s301
        %v601 = vmul.f32 %v392, %v600
        %v602 = vstv %s302
        %v603 = vmul.f32 %v415, %v602
        %v604 = vadd.f32 %v601, %v603
        %v605 = vstv %s303
        %v606 = vmul.f32 %v438, %v605
        %v607 = vadd.f32 %v604, %v606
        %v608 = vstv %s304
        %v609 = vmul.f32 %v461, %v608
        %v610 = vadd.f32 %v607, %v609
        %v611 = vstv %s305
        %v612 = vmul.f32 %v484, %v611
        %v613 = vadd.f32 %v610, %v612
        %v614 = vstv %s306
        %v615 = vmul.f32 %v507, %v614
        %v616 = vadd.f32 %v613, %v615
        %v617 = vstv %s307
        %v618 = vmul.f32 %v530, %v617
        %v619 = vadd.f32 %v616, %v618
        %v620 = vstv %s308
        %v621 = vmul.f32 %v553, %v620
        %v622 = vadd.f32 %v619, %v621
        %v623 = vstv %s309
        %v624 = vmul.f32 %v576, %v623
        %v625 = vadd.f32 %v622, %v624
        %v626 = vstv %s310
        %v627 = vmul.f32 %v599, %v626
        %v628 = vadd.f32 %v625, %v627
        %v629 = vstv %s341
        %v630 = vadd.f32 %v628, %v629
        %v631 = vmax.f32 %v630, 0.0
        %v632 = vstv %s311
        %v633 = vmul.f32 %v392, %v632
        %v634 = vstv %s312
        %v635 = vmul.f32 %v415, %v634
        %v636 = vadd.f32 %v633, %v635
        %v637 = vstv %s313
        %v638 = vmul.f32 %v438, %v637
        %v639 = vadd.f32 %v636, %v638
        %v640 = vstv %s314
        %v641 = vmul.f32 %v461, %v640
        %v642 = vadd.f32 %v639, %v641
        %v643 = vstv %s315
        %v644 = vmul.f32 %v484, %v643
        %v645 = vadd.f32 %v642, %v644
        %v646 = vstv %s316
        %v647 = vmul.f32 %v507, %v646
        %v648 = vadd.f32 %v645, %v647
        %v649 = vstv %s317
        %v650 = vmul.f32 %v530, %v649
        %v651 = vadd.f32 %v648, %v650
        %v652 = vstv %s318
        %v653 = vmul.f32 %v553, %v652
        %v654 = vadd.f32 %v651, %v653
        %v655 = vstv %s319
        %v656 = vmul.f32 %v576, %v655
        %v657 = vadd.f32 %v654, %v656
        %v658 = vstv %s320
        %v659 = vmul.f32 %v599, %v658
        %v660 = vadd.f32 %v657, %v659
        %v661 = vstv %s342
        %v662 = vadd.f32 %v660, %v661
        %v663 = vmax.f32 %v662, 0.0
        %v664 = vstv %s321
        %v665 = vmul.f32 %v392, %v664
        %v666 = vstv %s322
        %v667 = vmul.f32 %v415, %v666
        %v668 = vadd.f32 %v665, %v667
        %v669 = vstv %s323
        %v670 = vmul.f32 %v438, %v669
        %v671 = vadd.f32 %v668, %v670
        %v672 = vstv %s324
        %v673 = vmul.f32 %v461, %v672
        %v674 = vadd.f32 %v671, %v673
        %v675 = vstv %s325
        %v676 = vmul.f32 %v484, %v675
        %v677 = vadd.f32 %v674, %v676
        %v678 = vstv %s326
        %v679 = vmul.f32 %v507, %v678
        %v680 = vadd.f32 %v677, %v679
        %v681 = vstv %s327
        %v682 = vmul.f32 %v530, %v681
        %v683 = vadd.f32 %v680, %v682
        %v684 = vstv %s328
        %v685 = vmul.f32 %v553, %v684
        %v686 = vadd.f32 %v683, %v685
        %v687 = vstv %s329
        %v688 = vmul.f32 %v576, %v687
        %v689 = vadd.f32 %v686, %v688
        %v690 = vstv %s330
        %v691 = vmul.f32 %v599, %v690
        %v692 = vadd.f32 %v689, %v691
        %v693 = vstv %s343
        %v694 = vadd.f32 %v692, %v693
        %v695 = vmax.f32 %v694, 0.0
        %v696 = vstv %s331
        %v697 = vmul.f32 %v392, %v696
        %v698 = vstv %s332
        %v699 = vmul.f32 %v415, %v698
        %v700 = vadd.f32 %v697, %v699
        %v701 = vstv %s333
        %v702 = vmul.f32 %v438, %v701
        %v703 = vadd.f32 %v700, %v702
        %v704 = vstv %s334
        %v705 = vmul.f32 %v461, %v704
        %v706 = vadd.f32 %v703, %v705
        %v707 = vstv %s335
        %v708 = vmul.f32 %v484, %v707
        %v709 = vadd.f32 %v706, %v708
        %v710 = vstv %s336
        %v711 = vmul.f32 %v507, %v710
        %v712 = vadd.f32 %v709, %v711
        %v713 = vstv %s337
        %v714 = vmul.f32 %v530, %v713
        %v715 = vadd.f32 %v712, %v714
        %v716 = vstv %s338
        %v717 = vmul.f32 %v553, %v716
        %v718 = vadd.f32 %v715, %v717
        %v719 = vstv %s339
        %v720 = vmul.f32 %v576, %v719
        %v721 = vadd.f32 %v718, %v720
        %v722 = vstv %s340
        %v723 = vmul.f32 %v599, %v722
        %v724 = vadd.f32 %v721, %v723
        %v725 = vstv %s344
        %v726 = vadd.f32 %v724, %v725
        %v727 = vmax.f32 %v726, 0.0
        %v728 = vstv %s345
        %v729 = vmul.f32 %v631, %v728
        %v730 = vstv %s346
        %v731 = vmul.f32 %v663, %v730
        %v732 = vadd.f32 %v729, %v731
        %v733 = vstv %s347
        %v734 = vmul.f32 %v695, %v733
        %v735 = vadd.f32 %v732, %v734
        %v736 = vstv %s348
        %v737 = vmul.f32 %v727, %v736
        %v738 = vadd.f32 %v735, %v737
        %v739 = vstv %s349
        %v740 = vadd.f32 %v738, %v739
        %v741 = vsub.f32 0.0, %v740
        %v742 = vmul.f32 %v741, 1.442695
        %v743 = vpow.pop %v742
        %v744 = vadd.f32 %v743, 1.0
        %v745 = vrcp.pop %v744
        %v746 = vmul.f32 1.0, %v745
        %747 = vst [vmem:[%s220] sm:$0xff] %v746
        %s748 = sand.u32 %s72, 1
        %s749 = scalar_lea.sflag [#allocation3], %s748
        %s750 = sand.u32 %s72, 1
        %s751 = smul.addr %s750, 8
        %s752 = scalar_lea.vmem [#allocation6], %s751
        // Predicated region
        $region74: #{mlp_forward.1} parent=64 // pred_check
          %p753 = pneg %p82
        $region75: #{mlp_forward.1} parent=64 // pred_check_branch
          %755 = sbr.rel (%p753) target = $region77
        $region76: #{mlp_forward.1} parent=64 // pred_region
          %s757 = ssub.s32 128, 128
          %758 = vsyncadd %s749, %s757
          %s759 = smul.addr %s17, 128
          %s760 = scalar_lea.hbm %s2, %s759
          %s762 = sshll.u32 %s752, 4
          %s763 = int_to_ptr.vmem [resolvable:$true] %s762
          %765 = dma.vmem_to_hbm [thread:$0]  %s763, 128, %s760, %s749
        $region77: #{mlp_forward.1} parent=64 // pred_fallthru
          _
      $region65: #{mlp_forward.1} parent=5 // pred_fallthru
        _
      %p766 = scmp.le.s32.totalorder 2, %s12
      // Predicated region
      $region78: #{mlp_forward.1} parent=5 // pred_check
        %p767 = pneg %p766
      $region79: #{mlp_forward.1} parent=5 // pred_check_branch
        %769 = sbr.rel (%p767) target = $region81
      $region80: #{mlp_forward.1} parent=5 // pred_region
        %s770 = ssub.s32 %s12, 2
        // Predicated region
        $region82: #{mlp_forward.1} parent=80 // pred_check
          %p771 = pneg %p88
        $region83: #{mlp_forward.1} parent=80 // pred_check_branch
          %773 = sbr.rel (%p771) target = $region85
        $region84: #{mlp_forward.1} parent=80 // pred_region
          %s774 = sand.u32 %s73, 1
          %s775 = scalar_lea.sflag [#allocation3], %s774
          %s776 = sand.u32 %s73, 1
          %s777 = smul.addr %s776, 8
          %s778 = scalar_lea.vmem [#allocation6], %s777
          %779 = dma.done %s775, 128
        $region85: #{mlp_forward.1} parent=80 // pred_fallthru
          _
      $region81: #{mlp_forward.1} parent=5 // pred_fallthru
        _
    $region6: #{mlp_forward.1} parent=1 // loop_footer
      %s16 = sadd.s32 1, %s12
    $region7: #{mlp_forward.1} parent=1 // loop_footer_branch
      %11 = sbr.rel target = $region3
    $region8: #{mlp_forward.1} parent=1 // loop_exit
      _
    %780 = vsyncpa [#allocation3], 1
    %s781 = scalar_lea.sflag [#allocation3], 1
    %782 = vsyncpa %s781, 1
    %783 = vsyncpa [#allocation4], 1
    %s784 = scalar_lea.sflag [#allocation4], 1
    %785 = vsyncpa %s784, 1

</llo_original>
